<compile_context>
chip_gen: v5e
topology: v5e:2x2
jax: 0.10.0
libtpu: 0.0.40
codegen_flags: <defaults>
</compile_context>

<pallas_src>
import jax
import jax.numpy as jnp
from jax.experimental import pallas as pl
from jax.experimental.pallas import tpu as pltpu

BN_EPS = 1e-5
GIN_EPS = 0.0      # GINConv default eps
NUM_LAYERS = 4


# ----------------------------- fused Pallas kernel ---------------------------

def fused_dropgin_kernel(*refs):
    # refs = (x, keep, a_blockdiag, pool,
    #         [w1, b1, w2, b2] * NUM_LAYERS,          (BN pre-folded)
    #         fc_w_0 .. fc_w_NUM_LAYERS, fc_bias_sum,
    #         out)
    x_ref, keep_ref, a_ref, pool_ref = refs[:4]
    n_lw = 4 * NUM_LAYERS
    w_refs = refs[4:4 + n_lw]
    fc_refs = refs[4 + n_lw:4 + n_lw + NUM_LAYERS + 1]
    bf_ref = refs[4 + n_lw + NUM_LAYERS + 1]
    o_ref = refs[4 + n_lw + NUM_LAYERS + 2]

    N = x_ref.shape[0]
    P = keep_ref.shape[0] // N

    # Replicate node features across perturbations and apply node dropout,
    # entirely in VMEM (no expanded tensor ever hits HBM).
    x = x_ref[...]                                           # (N, Fin)
    h = jnp.concatenate([x] * P, axis=0) * keep_ref[...]     # (P*N, Fin)

    a = a_ref[...]        # block-diag adjacency, (1+eps)*I folded in
    pool = pool_ref[...]  # (G, P*N): mean-over-P + add-pool-per-graph

    # readout head 0 (on the dropped input features)
    pooled = jnp.dot(pool, h, preferred_element_type=jnp.float32)        # (G, Fin)
    logits = jnp.dot(pooled, fc_refs[0][...],
                     preferred_element_type=jnp.float32)                 # (G, C)

    for i in range(NUM_LAYERS):
        w1, b1, w2, b2 = w_refs[4 * i:4 * i + 4]
        # GIN aggregation: (1+eps)*x + sum_neighbors(x)  == a @ h
        g = jnp.dot(a, h, preferred_element_type=jnp.float32)            # (P*N, Fin_i)
        # MLP: Linear -> (folded BN) -> ReLU -> Linear -> (folded outer BN) -> ReLU
        g = jnp.dot(g, w1[...], preferred_element_type=jnp.float32) + b1[...]
        g = jnp.maximum(g, 0.0)
        g = jnp.dot(g, w2[...], preferred_element_type=jnp.float32) + b2[...]
        h = jnp.maximum(g, 0.0)                                          # (P*N, H)
        # readout head i+1
        pooled = jnp.dot(pool, h, preferred_element_type=jnp.float32)    # (G, H)
        logits = logits + jnp.dot(pooled, fc_refs[i + 1][...],
                                  preferred_element_type=jnp.float32)

    logits = logits + bf_ref[...]                                        # summed fc biases

    # log_softmax over classes
    m = jnp.max(logits, axis=-1, keepdims=True)
    z = logits - m
    lse = jnp.log(jnp.sum(jnp.exp(z), axis=-1, keepdims=True))
    o_ref[...] = z - lse


# ------------------------------- DropGIN glue --------------------------------

def _fold_bn(w, b, bn):
    """Fold eval-mode BatchNorm1d(bn = [gamma, beta, rm, rv]) into Linear (w, b)."""
    gamma, beta, rm, rv = bn[0], bn[1], bn[2], bn[3]
    scale = gamma * jax.lax.rsqrt(rv + BN_EPS)
    w_f = w * scale[None, :]
    b_f = (b - rm[None, :]) * scale[None, :] + beta[None, :]
    return w_f, b_f


def drop_gin_forward(params, x_nodes, adj, pool_mat, num_perturbations, p_drop, key):
    N, Fin = x_nodes.shape
    P = int(num_perturbations)
    G = pool_mat.shape[0]
    C = params["fcs"][0][0].shape[1]

    # node-dropout keep mask (1 keep / 0 drop); applied inside the kernel
    drop = jax.random.bernoulli(key, p_drop, (P, N))
    keep = (~drop).astype(jnp.float32).reshape(P * N, 1)

    # block-diagonal adjacency over perturbations + (1+eps) self loops folded in
    a_big = (jnp.kron(jnp.eye(P, dtype=jnp.float32), adj.astype(jnp.float32))
             + (1.0 + GIN_EPS) * jnp.eye(P * N, dtype=jnp.float32))

    # pooling matrix: mean over perturbations composed with global_add_pool
    pool_big = jnp.tile(pool_mat.astype(jnp.float32), (1, P)) / jnp.float32(P)

    # fold eval-mode BN into the adjacent Linear layers (free constant precompute)
    layer_args = []
    for (w1, b1, bn1, w2, b2, bn2) in params["convs"]:
        w1f, b1f = _fold_bn(w1, b1, bn1)   # inner BN of the GIN MLP
        w2f, b2f = _fold_bn(w2, b2, bn2)   # outer per-layer BN
        layer_args += [w1f, b1f, w2f, b2f]

    fc_ws = [w for (w, _) in params["fcs"]]
    bf_sum = sum(b for (_, b) in params["fcs"])   # (1, C)

    inputs = [x_nodes.astype(jnp.float32), keep, a_big, pool_big,
              *layer_args, *fc_ws, bf_sum]

    # TODO(synk): at scaled-up N the dense (P*N, P*N) adjacency must be K-tiled
    # (v7x has only 64 MiB VMEM); at this toy size everything fits comfortably.
    return pl.pallas_call(
        fused_dropgin_kernel,
        out_shape=jax.ShapeDtypeStruct((G, C), jnp.float32),
        in_specs=[pl.BlockSpec(memory_space=pltpu.MemorySpace.VMEM)] * len(inputs),
        out_specs=pl.BlockSpec(memory_space=pltpu.MemorySpace.VMEM),
    )(*inputs)


# ------------------------------ param helpers --------------------------------

def _linear(key, fan_in, fan_out):
    bound = 1.0 / jnp.sqrt(jnp.float32(fan_in))
    kw, kb = jax.random.split(key)
    w = jax.random.uniform(kw, (fan_in, fan_out), jnp.float32, -bound, bound)
    b = jax.random.uniform(kb, (1, fan_out), jnp.float32, -bound, bound)
    return w, b


def _bn(dim):
    # (gamma, beta, running_mean, running_var) after reset_parameters()
    return jnp.stack([jnp.ones(dim), jnp.zeros(dim),
                      jnp.zeros(dim), jnp.ones(dim)]).astype(jnp.float32)


def init_params(key, input_dim, hidden_dim, output_dim):
    keys = jax.random.split(key, 16)
    ki = iter(keys)
    convs, fcs = [], []
    w1, b1 = _linear(next(ki), input_dim, hidden_dim)
    w2, b2 = _linear(next(ki), hidden_dim, hidden_dim)
    convs.append((w1, b1, _bn(hidden_dim), w2, b2, _bn(hidden_dim)))
    for _ in range(NUM_LAYERS - 1):
        w1, b1 = _linear(next(ki), hidden_dim, hidden_dim)
        w2, b2 = _linear(next(ki), hidden_dim, hidden_dim)
        convs.append((w1, b1, _bn(hidden_dim), w2, b2, _bn(hidden_dim)))
    fcs.append(_linear(next(ki), input_dim, output_dim))
    for _ in range(NUM_LAYERS):
        fcs.append(_linear(next(ki), hidden_dim, output_dim))
    return {"convs": convs, "fcs": fcs}


# ----------------------------------- main ------------------------------------

if __name__ == "__main__":
    N, INPUT_DIM, HIDDEN, OUT_DIM = 16, 8, 32, 4
    NUM_PERTURB, P_DROP, NUM_GRAPHS = 4, 0.2, 2

    root = jax.random.PRNGKey(0)
    k_x, k_params, k_drop = jax.random.split(root, 3)

    # node features
    x_nodes = jax.random.normal(k_x, (N, INPUT_DIM), jnp.float32)

    # edge_index: two 8-node ring graphs (bidirectional edges) -> dense adjacency
    edges = []
    for g in range(NUM_GRAPHS):
        base = g * 8
        for i in range(8):
            s, t = base + i, base + (i + 1) % 8
            edges.append((s, t))
            edges.append((t, s))
    edge_index = jnp.array(edges, dtype=jnp.int32).T                      # (2, E)
    adj = jnp.zeros((N, N), jnp.float32).at[edge_index[1], edge_index[0]].add(1.0)

    # batch vector -> one-hot pooling matrix for global_add_pool
    batch = jnp.repeat(jnp.arange(NUM_GRAPHS, dtype=jnp.int32), N // NUM_GRAPHS)
    pool_mat = (batch[None, :] == jnp.arange(NUM_GRAPHS)[:, None]).astype(jnp.float32)

    params = init_params(k_params, INPUT_DIM, HIDDEN, OUT_DIM)

    fwd = jax.jit(drop_gin_forward, static_argnames=("num_perturbations",))
    out = fwd(params, x_nodes, adj, pool_mat,
              num_perturbations=NUM_PERTURB, p_drop=P_DROP, key=k_drop)
    out = jax.block_until_ready(out)

    assert out.shape == (NUM_GRAPHS, OUT_DIM)
    assert bool(jnp.all(jnp.isfinite(out)))
    print("KERNEL_OK")
</pallas_src>

<mosaic_0001>
module attributes {stable_mosaic.version = 11 : i64} {
  func.func @fused_dropgin_kernel(%arg0: memref<16x8xf32, #tpu.memory_space<vmem>>, %arg1: memref<64x1xf32, #tpu.memory_space<vmem>>, %arg2: memref<64x64xf32, #tpu.memory_space<vmem>>, %arg3: memref<2x64xf32, #tpu.memory_space<vmem>>, %arg4: memref<8x32xf32, #tpu.memory_space<vmem>>, %arg5: memref<1x32xf32, #tpu.memory_space<vmem>>, %arg6: memref<32x32xf32, #tpu.memory_space<vmem>>, %arg7: memref<1x32xf32, #tpu.memory_space<vmem>>, %arg8: memref<32x32xf32, #tpu.memory_space<vmem>>, %arg9: memref<1x32xf32, #tpu.memory_space<vmem>>, %arg10: memref<32x32xf32, #tpu.memory_space<vmem>>, %arg11: memref<1x32xf32, #tpu.memory_space<vmem>>, %arg12: memref<32x32xf32, #tpu.memory_space<vmem>>, %arg13: memref<1x32xf32, #tpu.memory_space<vmem>>, %arg14: memref<32x32xf32, #tpu.memory_space<vmem>>, %arg15: memref<1x32xf32, #tpu.memory_space<vmem>>, %arg16: memref<32x32xf32, #tpu.memory_space<vmem>>, %arg17: memref<1x32xf32, #tpu.memory_space<vmem>>, %arg18: memref<32x32xf32, #tpu.memory_space<vmem>>, %arg19: memref<1x32xf32, #tpu.memory_space<vmem>>, %arg20: memref<8x4xf32, #tpu.memory_space<vmem>>, %arg21: memref<32x4xf32, #tpu.memory_space<vmem>>, %arg22: memref<32x4xf32, #tpu.memory_space<vmem>>, %arg23: memref<32x4xf32, #tpu.memory_space<vmem>>, %arg24: memref<32x4xf32, #tpu.memory_space<vmem>>, %arg25: memref<1x4xf32, #tpu.memory_space<vmem>>, %arg26: memref<2x4xf32, #tpu.memory_space<vmem>>) attributes {dimension_semantics = [], scalar_prefetch = 0 : i64, scratch_operands = 0 : i64, tpu.core_type = #tpu.core_type<tc>} {
    %c0 = arith.constant 0 : index
    %c0_0 = arith.constant 0 : index
    %0 = vector.load %arg0[%c0, %c0_0] : memref<16x8xf32, #tpu.memory_space<vmem>>, vector<16x8xf32>
    %1 = tpu.concatenate %0, %0, %0, %0 in 0 : vector<16x8xf32>, vector<16x8xf32>, vector<16x8xf32>, vector<16x8xf32> -> vector<64x8xf32>
    %c0_1 = arith.constant 0 : index
    %c0_2 = arith.constant 0 : index
    %2 = vector.load %arg1[%c0_1, %c0_2] : memref<64x1xf32, #tpu.memory_space<vmem>>, vector<64x1xf32>
    %3 = vector.broadcast %2 : vector<64x1xf32> to vector<64x8xf32>
    %4 = arith.mulf %1, %3 : vector<64x8xf32>
    %c0_3 = arith.constant 0 : index
    %c0_4 = arith.constant 0 : index
    %5 = vector.load %arg2[%c0_3, %c0_4] : memref<64x64xf32, #tpu.memory_space<vmem>>, vector<64x64xf32>
    %c0_5 = arith.constant 0 : index
    %c0_6 = arith.constant 0 : index
    %6 = vector.load %arg3[%c0_5, %c0_6] : memref<2x64xf32, #tpu.memory_space<vmem>>, vector<2x64xf32>
    %cst = arith.constant dense<0.000000e+00> : vector<2x8xf32>
    %7 = tpu.matmul %6, %4, %cst {dimension_numbers = #tpu.dot_dimension_numbers<[1], [0], [0], [1], [0, 0, 1, 1], [], []>} : vector<2x64xf32>, vector<64x8xf32>, vector<2x8xf32> -> vector<2x8xf32>
    %c0_7 = arith.constant 0 : index
    %c0_8 = arith.constant 0 : index
    %8 = vector.load %arg20[%c0_7, %c0_8] : memref<8x4xf32, #tpu.memory_space<vmem>>, vector<8x4xf32>
    %cst_9 = arith.constant dense<0.000000e+00> : vector<2x4xf32>
    %9 = tpu.matmul %7, %8, %cst_9 {dimension_numbers = #tpu.dot_dimension_numbers<[1], [0], [0], [1], [0, 0, 1, 1], [], []>} : vector<2x8xf32>, vector<8x4xf32>, vector<2x4xf32> -> vector<2x4xf32>
    %cst_10 = arith.constant dense<0.000000e+00> : vector<64x8xf32>
    %10 = tpu.matmul %5, %4, %cst_10 {dimension_numbers = #tpu.dot_dimension_numbers<[1], [0], [0], [1], [0, 0, 1, 1], [], []>} : vector<64x64xf32>, vector<64x8xf32>, vector<64x8xf32> -> vector<64x8xf32>
    %c0_11 = arith.constant 0 : index
    %c0_12 = arith.constant 0 : index
    %11 = vector.load %arg4[%c0_11, %c0_12] : memref<8x32xf32, #tpu.memory_space<vmem>>, vector<8x32xf32>
    %cst_13 = arith.constant dense<0.000000e+00> : vector<64x32xf32>
    %12 = tpu.matmul %10, %11, %cst_13 {dimension_numbers = #tpu.dot_dimension_numbers<[1], [0], [0], [1], [0, 0, 1, 1], [], []>} : vector<64x8xf32>, vector<8x32xf32>, vector<64x32xf32> -> vector<64x32xf32>
    %c0_14 = arith.constant 0 : index
    %c0_15 = arith.constant 0 : index
    %13 = vector.load %arg5[%c0_14, %c0_15] : memref<1x32xf32, #tpu.memory_space<vmem>>, vector<1x32xf32>
    %14 = vector.broadcast %13 : vector<1x32xf32> to vector<64x32xf32>
    %15 = arith.addf %12, %14 : vector<64x32xf32>
    %cst_16 = arith.constant 0.000000e+00 : f32
    %16 = vector.broadcast %cst_16 : f32 to vector<64x32xf32>
    %17 = arith.maximumf %15, %16 : vector<64x32xf32>
    %c0_17 = arith.constant 0 : index
    %c0_18 = arith.constant 0 : index
    %18 = vector.load %arg6[%c0_17, %c0_18] : memref<32x32xf32, #tpu.memory_space<vmem>>, vector<32x32xf32>
    %cst_19 = arith.constant dense<0.000000e+00> : vector<64x32xf32>
    %19 = tpu.matmul %17, %18, %cst_19 {dimension_numbers = #tpu.dot_dimension_numbers<[1], [0], [0], [1], [0, 0, 1, 1], [], []>} : vector<64x32xf32>, vector<32x32xf32>, vector<64x32xf32> -> vector<64x32xf32>
    %c0_20 = arith.constant 0 : index
    %c0_21 = arith.constant 0 : index
    %20 = vector.load %arg7[%c0_20, %c0_21] : memref<1x32xf32, #tpu.memory_space<vmem>>, vector<1x32xf32>
    %21 = vector.broadcast %20 : vector<1x32xf32> to vector<64x32xf32>
    %22 = arith.addf %19, %21 : vector<64x32xf32>
    %cst_22 = arith.constant 0.000000e+00 : f32
    %23 = vector.broadcast %cst_22 : f32 to vector<64x32xf32>
    %24 = arith.maximumf %22, %23 : vector<64x32xf32>
    %cst_23 = arith.constant dense<0.000000e+00> : vector<2x32xf32>
    %25 = tpu.matmul %6, %24, %cst_23 {dimension_numbers = #tpu.dot_dimension_numbers<[1], [0], [0], [1], [0, 0, 1, 1], [], []>} : vector<2x64xf32>, vector<64x32xf32>, vector<2x32xf32> -> vector<2x32xf32>
    %c0_24 = arith.constant 0 : index
    %c0_25 = arith.constant 0 : index
    %26 = vector.load %arg21[%c0_24, %c0_25] : memref<32x4xf32, #tpu.memory_space<vmem>>, vector<32x4xf32>
    %cst_26 = arith.constant dense<0.000000e+00> : vector<2x4xf32>
    %27 = tpu.matmul %25, %26, %cst_26 {dimension_numbers = #tpu.dot_dimension_numbers<[1], [0], [0], [1], [0, 0, 1, 1], [], []>} : vector<2x32xf32>, vector<32x4xf32>, vector<2x4xf32> -> vector<2x4xf32>
    %28 = arith.addf %9, %27 : vector<2x4xf32>
    %cst_27 = arith.constant dense<0.000000e+00> : vector<64x32xf32>
    %29 = tpu.matmul %5, %24, %cst_27 {dimension_numbers = #tpu.dot_dimension_numbers<[1], [0], [0], [1], [0, 0, 1, 1], [], []>} : vector<64x64xf32>, vector<64x32xf32>, vector<64x32xf32> -> vector<64x32xf32>
    %c0_28 = arith.constant 0 : index
    %c0_29 = arith.constant 0 : index
    %30 = vector.load %arg8[%c0_28, %c0_29] : memref<32x32xf32, #tpu.memory_space<vmem>>, vector<32x32xf32>
    %cst_30 = arith.constant dense<0.000000e+00> : vector<64x32xf32>
    %31 = tpu.matmul %29, %30, %cst_30 {dimension_numbers = #tpu.dot_dimension_numbers<[1], [0], [0], [1], [0, 0, 1, 1], [], []>} : vector<64x32xf32>, vector<32x32xf32>, vector<64x32xf32> -> vector<64x32xf32>
    %c0_31 = arith.constant 0 : index
    %c0_32 = arith.constant 0 : index
    %32 = vector.load %arg9[%c0_31, %c0_32] : memref<1x32xf32, #tpu.memory_space<vmem>>, vector<1x32xf32>
    %33 = vector.broadcast %32 : vector<1x32xf32> to vector<64x32xf32>
    %34 = arith.addf %31, %33 : vector<64x32xf32>
    %cst_33 = arith.constant 0.000000e+00 : f32
    %35 = vector.broadcast %cst_33 : f32 to vector<64x32xf32>
    %36 = arith.maximumf %34, %35 : vector<64x32xf32>
    %c0_34 = arith.constant 0 : index
    %c0_35 = arith.constant 0 : index
    %37 = vector.load %arg10[%c0_34, %c0_35] : memref<32x32xf32, #tpu.memory_space<vmem>>, vector<32x32xf32>
    %cst_36 = arith.constant dense<0.000000e+00> : vector<64x32xf32>
    %38 = tpu.matmul %36, %37, %cst_36 {dimension_numbers = #tpu.dot_dimension_numbers<[1], [0], [0], [1], [0, 0, 1, 1], [], []>} : vector<64x32xf32>, vector<32x32xf32>, vector<64x32xf32> -> vector<64x32xf32>
    %c0_37 = arith.constant 0 : index
    %c0_38 = arith.constant 0 : index
    %39 = vector.load %arg11[%c0_37, %c0_38] : memref<1x32xf32, #tpu.memory_space<vmem>>, vector<1x32xf32>
    %40 = vector.broadcast %39 : vector<1x32xf32> to vector<64x32xf32>
    %41 = arith.addf %38, %40 : vector<64x32xf32>
    %cst_39 = arith.constant 0.000000e+00 : f32
    %42 = vector.broadcast %cst_39 : f32 to vector<64x32xf32>
    %43 = arith.maximumf %41, %42 : vector<64x32xf32>
    %cst_40 = arith.constant dense<0.000000e+00> : vector<2x32xf32>
    %44 = tpu.matmul %6, %43, %cst_40 {dimension_numbers = #tpu.dot_dimension_numbers<[1], [0], [0], [1], [0, 0, 1, 1], [], []>} : vector<2x64xf32>, vector<64x32xf32>, vector<2x32xf32> -> vector<2x32xf32>
    %c0_41 = arith.constant 0 : index
    %c0_42 = arith.constant 0 : index
    %45 = vector.load %arg22[%c0_41, %c0_42] : memref<32x4xf32, #tpu.memory_space<vmem>>, vector<32x4xf32>
    %cst_43 = arith.constant dense<0.000000e+00> : vector<2x4xf32>
    %46 = tpu.matmul %44, %45, %cst_43 {dimension_numbers = #tpu.dot_dimension_numbers<[1], [0], [0], [1], [0, 0, 1, 1], [], []>} : vector<2x32xf32>, vector<32x4xf32>, vector<2x4xf32> -> vector<2x4xf32>
    %47 = arith.addf %28, %46 : vector<2x4xf32>
    %cst_44 = arith.constant dense<0.000000e+00> : vector<64x32xf32>
    %48 = tpu.matmul %5, %43, %cst_44 {dimension_numbers = #tpu.dot_dimension_numbers<[1], [0], [0], [1], [0, 0, 1, 1], [], []>} : vector<64x64xf32>, vector<64x32xf32>, vector<64x32xf32> -> vector<64x32xf32>
    %c0_45 = arith.constant 0 : index
    %c0_46 = arith.constant 0 : index
    %49 = vector.load %arg12[%c0_45, %c0_46] : memref<32x32xf32, #tpu.memory_space<vmem>>, vector<32x32xf32>
    %cst_47 = arith.constant dense<0.000000e+00> : vector<64x32xf32>
    %50 = tpu.matmul %48, %49, %cst_47 {dimension_numbers = #tpu.dot_dimension_numbers<[1], [0], [0], [1], [0, 0, 1, 1], [], []>} : vector<64x32xf32>, vector<32x32xf32>, vector<64x32xf32> -> vector<64x32xf32>
    %c0_48 = arith.constant 0 : index
    %c0_49 = arith.constant 0 : index
    %51 = vector.load %arg13[%c0_48, %c0_49] : memref<1x32xf32, #tpu.memory_space<vmem>>, vector<1x32xf32>
    %52 = vector.broadcast %51 : vector<1x32xf32> to vector<64x32xf32>
    %53 = arith.addf %50, %52 : vector<64x32xf32>
    %cst_50 = arith.constant 0.000000e+00 : f32
    %54 = vector.broadcast %cst_50 : f32 to vector<64x32xf32>
    %55 = arith.maximumf %53, %54 : vector<64x32xf32>
    %c0_51 = arith.constant 0 : index
    %c0_52 = arith.constant 0 : index
    %56 = vector.load %arg14[%c0_51, %c0_52] : memref<32x32xf32, #tpu.memory_space<vmem>>, vector<32x32xf32>
    %cst_53 = arith.constant dense<0.000000e+00> : vector<64x32xf32>
    %57 = tpu.matmul %55, %56, %cst_53 {dimension_numbers = #tpu.dot_dimension_numbers<[1], [0], [0], [1], [0, 0, 1, 1], [], []>} : vector<64x32xf32>, vector<32x32xf32>, vector<64x32xf32> -> vector<64x32xf32>
    %c0_54 = arith.constant 0 : index
    %c0_55 = arith.constant 0 : index
    %58 = vector.load %arg15[%c0_54, %c0_55] : memref<1x32xf32, #tpu.memory_space<vmem>>, vector<1x32xf32>
    %59 = vector.broadcast %58 : vector<1x32xf32> to vector<64x32xf32>
    %60 = arith.addf %57, %59 : vector<64x32xf32>
    %cst_56 = arith.constant 0.000000e+00 : f32
    %61 = vector.broadcast %cst_56 : f32 to vector<64x32xf32>
    %62 = arith.maximumf %60, %61 : vector<64x32xf32>
    %cst_57 = arith.constant dense<0.000000e+00> : vector<2x32xf32>
    %63 = tpu.matmul %6, %62, %cst_57 {dimension_numbers = #tpu.dot_dimension_numbers<[1], [0], [0], [1], [0, 0, 1, 1], [], []>} : vector<2x64xf32>, vector<64x32xf32>, vector<2x32xf32> -> vector<2x32xf32>
    %c0_58 = arith.constant 0 : index
    %c0_59 = arith.constant 0 : index
    %64 = vector.load %arg23[%c0_58, %c0_59] : memref<32x4xf32, #tpu.memory_space<vmem>>, vector<32x4xf32>
    %cst_60 = arith.constant dense<0.000000e+00> : vector<2x4xf32>
    %65 = tpu.matmul %63, %64, %cst_60 {dimension_numbers = #tpu.dot_dimension_numbers<[1], [0], [0], [1], [0, 0, 1, 1], [], []>} : vector<2x32xf32>, vector<32x4xf32>, vector<2x4xf32> -> vector<2x4xf32>
    %66 = arith.addf %47, %65 : vector<2x4xf32>
    %cst_61 = arith.constant dense<0.000000e+00> : vector<64x32xf32>
    %67 = tpu.matmul %5, %62, %cst_61 {dimension_numbers = #tpu.dot_dimension_numbers<[1], [0], [0], [1], [0, 0, 1, 1], [], []>} : vector<64x64xf32>, vector<64x32xf32>, vector<64x32xf32> -> vector<64x32xf32>
    %c0_62 = arith.constant 0 : index
    %c0_63 = arith.constant 0 : index
    %68 = vector.load %arg16[%c0_62, %c0_63] : memref<32x32xf32, #tpu.memory_space<vmem>>, vector<32x32xf32>
    %cst_64 = arith.constant dense<0.000000e+00> : vector<64x32xf32>
    %69 = tpu.matmul %67, %68, %cst_64 {dimension_numbers = #tpu.dot_dimension_numbers<[1], [0], [0], [1], [0, 0, 1, 1], [], []>} : vector<64x32xf32>, vector<32x32xf32>, vector<64x32xf32> -> vector<64x32xf32>
    %c0_65 = arith.constant 0 : index
    %c0_66 = arith.constant 0 : index
    %70 = vector.load %arg17[%c0_65, %c0_66] : memref<1x32xf32, #tpu.memory_space<vmem>>, vector<1x32xf32>
    %71 = vector.broadcast %70 : vector<1x32xf32> to vector<64x32xf32>
    %72 = arith.addf %69, %71 : vector<64x32xf32>
    %cst_67 = arith.constant 0.000000e+00 : f32
    %73 = vector.broadcast %cst_67 : f32 to vector<64x32xf32>
    %74 = arith.maximumf %72, %73 : vector<64x32xf32>
    %c0_68 = arith.constant 0 : index
    %c0_69 = arith.constant 0 : index
    %75 = vector.load %arg18[%c0_68, %c0_69] : memref<32x32xf32, #tpu.memory_space<vmem>>, vector<32x32xf32>
    %cst_70 = arith.constant dense<0.000000e+00> : vector<64x32xf32>
    %76 = tpu.matmul %74, %75, %cst_70 {dimension_numbers = #tpu.dot_dimension_numbers<[1], [0], [0], [1], [0, 0, 1, 1], [], []>} : vector<64x32xf32>, vector<32x32xf32>, vector<64x32xf32> -> vector<64x32xf32>
    %c0_71 = arith.constant 0 : index
    %c0_72 = arith.constant 0 : index
    %77 = vector.load %arg19[%c0_71, %c0_72] : memref<1x32xf32, #tpu.memory_space<vmem>>, vector<1x32xf32>
    %78 = vector.broadcast %77 : vector<1x32xf32> to vector<64x32xf32>
    %79 = arith.addf %76, %78 : vector<64x32xf32>
    %cst_73 = arith.constant 0.000000e+00 : f32
    %80 = vector.broadcast %cst_73 : f32 to vector<64x32xf32>
    %81 = arith.maximumf %79, %80 : vector<64x32xf32>
    %cst_74 = arith.constant dense<0.000000e+00> : vector<2x32xf32>
    %82 = tpu.matmul %6, %81, %cst_74 {dimension_numbers = #tpu.dot_dimension_numbers<[1], [0], [0], [1], [0, 0, 1, 1], [], []>} : vector<2x64xf32>, vector<64x32xf32>, vector<2x32xf32> -> vector<2x32xf32>
    %c0_75 = arith.constant 0 : index
    %c0_76 = arith.constant 0 : index
    %83 = vector.load %arg24[%c0_75, %c0_76] : memref<32x4xf32, #tpu.memory_space<vmem>>, vector<32x4xf32>
    %cst_77 = arith.constant dense<0.000000e+00> : vector<2x4xf32>
    %84 = tpu.matmul %82, %83, %cst_77 {dimension_numbers = #tpu.dot_dimension_numbers<[1], [0], [0], [1], [0, 0, 1, 1], [], []>} : vector<2x32xf32>, vector<32x4xf32>, vector<2x4xf32> -> vector<2x4xf32>
    %85 = arith.addf %66, %84 : vector<2x4xf32>
    %c0_78 = arith.constant 0 : index
    %c0_79 = arith.constant 0 : index
    %86 = vector.load %arg25[%c0_78, %c0_79] : memref<1x4xf32, #tpu.memory_space<vmem>>, vector<1x4xf32>
    %87 = vector.broadcast %86 : vector<1x4xf32> to vector<2x4xf32>
    %88 = arith.addf %85, %87 : vector<2x4xf32>
    %cst_80 = arith.constant dense<0xFF800000> : vector<2xf32>
    %89 = vector.multi_reduction <maximumf>, %88, %cst_80 [1] : vector<2x4xf32> to vector<2xf32>
    %90 = vector.shape_cast %89 : vector<2xf32> to vector<2x1xf32>
    %91 = vector.broadcast %90 : vector<2x1xf32> to vector<2x4xf32>
    %92 = arith.subf %88, %91 : vector<2x4xf32>
    %93 = math.exp %92 : vector<2x4xf32>
    %cst_81 = arith.constant dense<0.000000e+00> : vector<2xf32>
    %94 = vector.multi_reduction <add>, %93, %cst_81 [1] : vector<2x4xf32> to vector<2xf32>
    %95 = vector.shape_cast %94 : vector<2xf32> to vector<2x1xf32>
    %96 = math.log %95 : vector<2x1xf32>
    %97 = vector.broadcast %96 : vector<2x1xf32> to vector<2x4xf32>
    %98 = arith.subf %92, %97 : vector<2x4xf32>
    %c0_82 = arith.constant 0 : index
    %c0_83 = arith.constant 0 : index
    %99 = vector.load %arg26[%c0_82, %c0_83] : memref<2x4xf32, #tpu.memory_space<vmem>>, vector<2x4xf32>
    tpu.vector_store %arg26[%c0_82, %c0_83], %98 {strides = array<i32>} : memref<2x4xf32, #tpu.memory_space<vmem>>, vector<2x4xf32>,
    return
  }
}

</mosaic_0001>

<llo_original>
// kernel: drop_gin_forward.1
$region0: #{drop_gin_forward.1}
  #allocation0 [shape = 'u32[]', space=smem, size = 0x4, offset = 0x4, fixed_abs, tag = 'smem constant byte address 0x4 - core index']
  #allocation1 [shape = 'u32[72,128]{1,0:T(1,128)}', space=vmem, size = 0x9000, scoped, tag = 'internal scratch']
  %s0 = inlined_call_operand.vmem [shape: f32[16,8], index: 0, kind: input, shape index: {}]
  %s1 = inlined_call_operand.vmem [shape: f32[64,1], index: 1, kind: input, shape index: {}]
  %s2 = inlined_call_operand.vmem [shape: f32[64,64], index: 2, kind: input, shape index: {}]
  %s3 = inlined_call_operand.vmem [shape: f32[2,64], index: 3, kind: input, shape index: {}]
  %s4 = inlined_call_operand.vmem [shape: f32[8,32], index: 4, kind: input, shape index: {}]
  %s5 = inlined_call_operand.vmem [shape: f32[1,32], index: 5, kind: input, shape index: {}]
  %s6 = inlined_call_operand.vmem [shape: f32[32,32], index: 6, kind: input, shape index: {}]
  %s7 = inlined_call_operand.vmem [shape: f32[1,32], index: 7, kind: input, shape index: {}]
  %s8 = inlined_call_operand.vmem [shape: f32[32,32], index: 8, kind: input, shape index: {}]
  %s9 = inlined_call_operand.vmem [shape: f32[1,32], index: 9, kind: input, shape index: {}]
  %s10 = inlined_call_operand.vmem [shape: f32[32,32], index: 10, kind: input, shape index: {}]
  %s11 = inlined_call_operand.vmem [shape: f32[1,32], index: 11, kind: input, shape index: {}]
  %s12 = inlined_call_operand.vmem [shape: f32[32,32], index: 12, kind: input, shape index: {}]
  %s13 = inlined_call_operand.vmem [shape: f32[1,32], index: 13, kind: input, shape index: {}]
  %s14 = inlined_call_operand.vmem [shape: f32[32,32], index: 14, kind: input, shape index: {}]
  %s15 = inlined_call_operand.vmem [shape: f32[1,32], index: 15, kind: input, shape index: {}]
  %s16 = inlined_call_operand.vmem [shape: f32[32,32], index: 16, kind: input, shape index: {}]
  %s17 = inlined_call_operand.vmem [shape: f32[1,32], index: 17, kind: input, shape index: {}]
  %s18 = inlined_call_operand.vmem [shape: f32[32,32], index: 18, kind: input, shape index: {}]
  %s19 = inlined_call_operand.vmem [shape: f32[1,32], index: 19, kind: input, shape index: {}]
  %s20 = inlined_call_operand.vmem [shape: f32[8,4], index: 20, kind: input, shape index: {}]
  %s21 = inlined_call_operand.vmem [shape: f32[32,4], index: 21, kind: input, shape index: {}]
  %s22 = inlined_call_operand.vmem [shape: f32[32,4], index: 22, kind: input, shape index: {}]
  %s23 = inlined_call_operand.vmem [shape: f32[32,4], index: 23, kind: input, shape index: {}]
  %s24 = inlined_call_operand.vmem [shape: f32[32,4], index: 24, kind: input, shape index: {}]
  %s25 = inlined_call_operand.vmem [shape: f32[1,4], index: 25, kind: input, shape index: {}]
  %s26 = inlined_call_operand.hbm [shape: f32[2,4], index: 26, kind: output, shape index: {}]
  %s27 = sld [smem:[#allocation0]]
  $region114: #{drop_gin_forward.1} parent=0
    _
  %s29 = ssub.s32 1, %s27
  %s30 = scalar_select 0, %s29, %s27
  $region1: #{drop_gin_forward.1} parent=0
    #allocation2 [shape = 'u8[1024]{0}', space=vmem, size = 0x400, scoped, tag = 'output window, operand 0, single buffered']
    #allocation3 [shape = 's32[1]{0}', space=sflag, size = 0x4, scoped, tag = 'scoped memory for drop_gin_forward.1']
    %31 = vsyncpa [#allocation3], 0
    // Predicated region
    $region2: #{drop_gin_forward.1} parent=1 // pred_check
      _
    $region3: #{drop_gin_forward.1} parent=1 // pred_check_branch
      %33 = sbr.rel (0) target = $region5
    $region4: #{drop_gin_forward.1} parent=1 // pred_region
      _
    $region5: #{drop_gin_forward.1} parent=1 // pred_fallthru
      _
    // Predicated region
    $region6: #{drop_gin_forward.1} parent=1 // pred_check
      _
    $region7: #{drop_gin_forward.1} parent=1 // pred_check_branch
      %35 = sbr.rel (0) target = $region9
    $region8: #{drop_gin_forward.1} parent=1 // pred_region
      _
    $region9: #{drop_gin_forward.1} parent=1 // pred_fallthru
      _
    // Predicated region
    $region10: #{drop_gin_forward.1} parent=1 // pred_check
      _
    $region11: #{drop_gin_forward.1} parent=1 // pred_check_branch
      %37 = sbr.rel (0) target = $region13
    $region12: #{drop_gin_forward.1} parent=1 // pred_region
      _
    $region13: #{drop_gin_forward.1} parent=1 // pred_fallthru
      _
    // Predicated region
    $region14: #{drop_gin_forward.1} parent=1 // pred_check
      _
    $region15: #{drop_gin_forward.1} parent=1 // pred_check_branch
      %39 = sbr.rel (0) target = $region17
    $region16: #{drop_gin_forward.1} parent=1 // pred_region
      _
    $region17: #{drop_gin_forward.1} parent=1 // pred_fallthru
      _
    // Predicated region
    $region18: #{drop_gin_forward.1} parent=1 // pred_check
      _
    $region19: #{drop_gin_forward.1} parent=1 // pred_check_branch
      %41 = sbr.rel (0) target = $region21
    $region20: #{drop_gin_forward.1} parent=1 // pred_region
      _
    $region21: #{drop_gin_forward.1} parent=1 // pred_fallthru
      _
    // Predicated region
    $region22: #{drop_gin_forward.1} parent=1 // pred_check
      _
    $region23: #{drop_gin_forward.1} parent=1 // pred_check_branch
      %43 = sbr.rel (0) target = $region25
    $region24: #{drop_gin_forward.1} parent=1 // pred_region
      _
    $region25: #{drop_gin_forward.1} parent=1 // pred_fallthru
      _
    // Predicated region
    $region26: #{drop_gin_forward.1} parent=1 // pred_check
      _
    $region27: #{drop_gin_forward.1} parent=1 // pred_check_branch
      %45 = sbr.rel (0) target = $region29
    $region28: #{drop_gin_forward.1} parent=1 // pred_region
      _
    $region29: #{drop_gin_forward.1} parent=1 // pred_fallthru
      _
    // Predicated region
    $region30: #{drop_gin_forward.1} parent=1 // pred_check
      _
    $region31: #{drop_gin_forward.1} parent=1 // pred_check_branch
      %47 = sbr.rel (0) target = $region33
    $region32: #{drop_gin_forward.1} parent=1 // pred_region
      _
    $region33: #{drop_gin_forward.1} parent=1 // pred_fallthru
      _
    // Predicated region
    $region34: #{drop_gin_forward.1} parent=1 // pred_check
      _
    $region35: #{drop_gin_forward.1} parent=1 // pred_check_branch
      %49 = sbr.rel (0) target = $region37
    $region36: #{drop_gin_forward.1} parent=1 // pred_region
      _
    $region37: #{drop_gin_forward.1} parent=1 // pred_fallthru
      _
    // Predicated region
    $region38: #{drop_gin_forward.1} parent=1 // pred_check
      _
    $region39: #{drop_gin_forward.1} parent=1 // pred_check_branch
      %51 = sbr.rel (0) target = $region41
    $region40: #{drop_gin_forward.1} parent=1 // pred_region
      _
    $region41: #{drop_gin_forward.1} parent=1 // pred_fallthru
      _
    // Predicated region
    $region42: #{drop_gin_forward.1} parent=1 // pred_check
      _
    $region43: #{drop_gin_forward.1} parent=1 // pred_check_branch
      %53 = sbr.rel (0) target = $region45
    $region44: #{drop_gin_forward.1} parent=1 // pred_region
      _
    $region45: #{drop_gin_forward.1} parent=1 // pred_fallthru
      _
    // Predicated region
    $region46: #{drop_gin_forward.1} parent=1 // pred_check
      _
    $region47: #{drop_gin_forward.1} parent=1 // pred_check_branch
      %55 = sbr.rel (0) target = $region49
    $region48: #{drop_gin_forward.1} parent=1 // pred_region
      _
    $region49: #{drop_gin_forward.1} parent=1 // pred_fallthru
      _
    // Predicated region
    $region50: #{drop_gin_forward.1} parent=1 // pred_check
      _
    $region51: #{drop_gin_forward.1} parent=1 // pred_check_branch
      %57 = sbr.rel (0) target = $region53
    $region52: #{drop_gin_forward.1} parent=1 // pred_region
      _
    $region53: #{drop_gin_forward.1} parent=1 // pred_fallthru
      _
    // Predicated region
    $region54: #{drop_gin_forward.1} parent=1 // pred_check
      _
    $region55: #{drop_gin_forward.1} parent=1 // pred_check_branch
      %59 = sbr.rel (0) target = $region57
    $region56: #{drop_gin_forward.1} parent=1 // pred_region
      _
    $region57: #{drop_gin_forward.1} parent=1 // pred_fallthru
      _
    // Predicated region
    $region58: #{drop_gin_forward.1} parent=1 // pred_check
      _
    $region59: #{drop_gin_forward.1} parent=1 // pred_check_branch
      %61 = sbr.rel (0) target = $region61
    $region60: #{drop_gin_forward.1} parent=1 // pred_region
      _
    $region61: #{drop_gin_forward.1} parent=1 // pred_fallthru
      _
    // Predicated region
    $region62: #{drop_gin_forward.1} parent=1 // pred_check
      _
    $region63: #{drop_gin_forward.1} parent=1 // pred_check_branch
      %63 = sbr.rel (0) target = $region65
    $region64: #{drop_gin_forward.1} parent=1 // pred_region
      _
    $region65: #{drop_gin_forward.1} parent=1 // pred_fallthru
      _
    // Predicated region
    $region66: #{drop_gin_forward.1} parent=1 // pred_check
      _
    $region67: #{drop_gin_forward.1} parent=1 // pred_check_branch
      %65 = sbr.rel (0) target = $region69
    $region68: #{drop_gin_forward.1} parent=1 // pred_region
      _
    $region69: #{drop_gin_forward.1} parent=1 // pred_fallthru
      _
    // Predicated region
    $region70: #{drop_gin_forward.1} parent=1 // pred_check
      _
    $region71: #{drop_gin_forward.1} parent=1 // pred_check_branch
      %67 = sbr.rel (0) target = $region73
    $region72: #{drop_gin_forward.1} parent=1 // pred_region
      _
    $region73: #{drop_gin_forward.1} parent=1 // pred_fallthru
      _
    // Predicated region
    $region74: #{drop_gin_forward.1} parent=1 // pred_check
      _
    $region75: #{drop_gin_forward.1} parent=1 // pred_check_branch
      %69 = sbr.rel (0) target = $region77
    $region76: #{drop_gin_forward.1} parent=1 // pred_region
      _
    $region77: #{drop_gin_forward.1} parent=1 // pred_fallthru
      _
    // Predicated region
    $region78: #{drop_gin_forward.1} parent=1 // pred_check
      _
    $region79: #{drop_gin_forward.1} parent=1 // pred_check_branch
      %71 = sbr.rel (0) target = $region81
    $region80: #{drop_gin_forward.1} parent=1 // pred_region
      _
    $region81: #{drop_gin_forward.1} parent=1 // pred_fallthru
      _
    // Predicated region
    $region82: #{drop_gin_forward.1} parent=1 // pred_check
      _
    $region83: #{drop_gin_forward.1} parent=1 // pred_check_branch
      %73 = sbr.rel (0) target = $region85
    $region84: #{drop_gin_forward.1} parent=1 // pred_region
      _
    $region85: #{drop_gin_forward.1} parent=1 // pred_fallthru
      _
    // Predicated region
    $region86: #{drop_gin_forward.1} parent=1 // pred_check
      _
    $region87: #{drop_gin_forward.1} parent=1 // pred_check_branch
      %75 = sbr.rel (0) target = $region89
    $region88: #{drop_gin_forward.1} parent=1 // pred_region
      _
    $region89: #{drop_gin_forward.1} parent=1 // pred_fallthru
      _
    // Predicated region
    $region90: #{drop_gin_forward.1} parent=1 // pred_check
      _
    $region91: #{drop_gin_forward.1} parent=1 // pred_check_branch
      %77 = sbr.rel (0) target = $region93
    $region92: #{drop_gin_forward.1} parent=1 // pred_region
      _
    $region93: #{drop_gin_forward.1} parent=1 // pred_fallthru
      _
    // Predicated region
    $region94: #{drop_gin_forward.1} parent=1 // pred_check
      _
    $region95: #{drop_gin_forward.1} parent=1 // pred_check_branch
      %79 = sbr.rel (0) target = $region97
    $region96: #{drop_gin_forward.1} parent=1 // pred_region
      _
    $region97: #{drop_gin_forward.1} parent=1 // pred_fallthru
      _
    // Predicated region
    $region98: #{drop_gin_forward.1} parent=1 // pred_check
      _
    $region99: #{drop_gin_forward.1} parent=1 // pred_check_branch
      %81 = sbr.rel (0) target = $region101
    $region100: #{drop_gin_forward.1} parent=1 // pred_region
      _
    $region101: #{drop_gin_forward.1} parent=1 // pred_fallthru
      _
    // Predicated region
    $region102: #{drop_gin_forward.1} parent=1 // pred_check
      _
    $region103: #{drop_gin_forward.1} parent=1 // pred_check_branch
      %83 = sbr.rel (0) target = $region105
    $region104: #{drop_gin_forward.1} parent=1 // pred_region
      _
    $region105: #{drop_gin_forward.1} parent=1 // pred_fallthru
      _
    %v84 = vld [vmem:[%s0] sm:$0xff]
    %v85 = vld [vmem:[%s0 + $0x8] sm:$0xff]
    %v86 = vld [vmem:[%s1] sm:$0xff]
    %v87 = vld [vmem:[%s1 + $0x8] sm:$0xff]
    %v88 = vld [vmem:[%s1 + $0x10] sm:$0xff]
    %v89 = vld [vmem:[%s1 + $0x18] sm:$0xff]
    %v90 = vld [vmem:[%s1 + $0x20] sm:$0xff]
    %v91 = vld [vmem:[%s1 + $0x28] sm:$0xff]
    %v92 = vld [vmem:[%s1 + $0x30] sm:$0xff]
    %v93 = vld [vmem:[%s1 + $0x38] sm:$0xff]
    %95 = vset.pattern.permute.xlu0 0
    %96 = vperm.xlu0 %95, %v86
    %v97 = vpop.permute.xlu0 %96
    %100 = vset.pattern.permute.xlu0 0
    %101 = vperm.xlu0 %100, %v87
    %v102 = vpop.permute.xlu0 %101
    %105 = vset.pattern.permute.xlu0 0
    %106 = vperm.xlu0 %105, %v88
    %v107 = vpop.permute.xlu0 %106
    %110 = vset.pattern.permute.xlu0 0
    %111 = vperm.xlu0 %110, %v89
    %v112 = vpop.permute.xlu0 %111
    %115 = vset.pattern.permute.xlu0 0
    %116 = vperm.xlu0 %115, %v90
    %v117 = vpop.permute.xlu0 %116
    %120 = vset.pattern.permute.xlu0 0
    %121 = vperm.xlu0 %120, %v91
    %v122 = vpop.permute.xlu0 %121
    %125 = vset.pattern.permute.xlu0 0
    %126 = vperm.xlu0 %125, %v92
    %v127 = vpop.permute.xlu0 %126
    %130 = vset.pattern.permute.xlu0 0
    %131 = vperm.xlu0 %130, %v93
    %v132 = vpop.permute.xlu0 %131
    %v134 = vmul.f32 %v84, %v97
    %v135 = vmul.f32 %v85, %v102
    %v136 = vmul.f32 %v84, %v107
    %v137 = vmul.f32 %v85, %v112
    %v138 = vmul.f32 %v84, %v117
    %v139 = vmul.f32 %v85, %v122
    %v140 = vmul.f32 %v84, %v127
    %v141 = vmul.f32 %v85, %v132
    %v142 = vld [vmem:[%s2] sm:$0xff]
    %v143 = vld [vmem:[%s2 + $0x8] sm:$0xff]
    %v144 = vld [vmem:[%s2 + $0x10] sm:$0xff]
    %v145 = vld [vmem:[%s2 + $0x18] sm:$0xff]
    %v146 = vld [vmem:[%s2 + $0x20] sm:$0xff]
    %v147 = vld [vmem:[%s2 + $0x28] sm:$0xff]
    %v148 = vld [vmem:[%s2 + $0x30] sm:$0xff]
    %v149 = vld [vmem:[%s2 + $0x38] sm:$0xff]
    %v150 = vld [vmem:[%s3] sm:$0x3]
    %vm151 = vcmask 523264
    %v153 = vsel %vm151, %v150, 0
    %155 = vmatpush.msra.mxu0 0.0
    %156 = vmatpush.msra.mxu0 0.0
    %157 = vmatpush.msra.mxu0 0.0
    %158 = vmatpush.msra.mxu0 0.0
    %159 = vmatpush.msra.mxu0 0.0
    %160 = vmatpush.msra.mxu0 0.0
    %161 = vmatpush.msra.mxu0 0.0
    %162 = vmatpush.msra.mxu0 0.0
    %163 = vmatpush.msra.mxu0 %v141
    %164 = vmatpush.msra.mxu0 %v140
    %165 = vmatpush.msra.mxu0 %v139
    %166 = vmatpush.msra.mxu0 %v138
    %167 = vmatpush.msra.mxu0 %v137
    %168 = vmatpush.msra.mxu0 %v136
    %169 = vmatpush.msra.mxu0 %v135
    %170 = vmatpush.msra.mxu0 %v134
    %171 = vmatmul.f32.gmra.mxu0 %v153
    %v172 = vpop.f32.mrf.mxu0
    %v173 = vadd.f32 0.0, %v172
    %174 = vdwg.mxu0
    %v175 = vld [vmem:[%s20] sm:$0xff]
    %v177 = vsel %vm151, %v142, 0
    %v180 = vsel %vm151, %v143, 0
    %v183 = vsel %vm151, %v144, 0
    %v186 = vsel %vm151, %v145, 0
    %v189 = vsel %vm151, %v146, 0
    %v192 = vsel %vm151, %v147, 0
    %v195 = vsel %vm151, %v148, 0
    %v198 = vsel %vm151, %v149, 0
    %200 = vmatpush.msra.mxu0 0.0
    %201 = vmatpush.msra.mxu0 0.0
    %202 = vmatpush.msra.mxu0 0.0
    %203 = vmatpush.msra.mxu0 0.0
    %204 = vmatpush.msra.mxu0 0.0
    %205 = vmatpush.msra.mxu0 0.0
    %206 = vmatpush.msra.mxu0 0.0
    %207 = vmatpush.msra.mxu0 0.0
    %208 = vmatpush.msra.mxu0 %v141
    %209 = vmatpush.msra.mxu0 %v140
    %210 = vmatpush.msra.mxu0 %v139
    %211 = vmatpush.msra.mxu0 %v138
    %212 = vmatpush.msra.mxu0 %v137
    %213 = vmatpush.msra.mxu0 %v136
    %214 = vmatpush.msra.mxu0 %v135
    %215 = vmatpush.msra.mxu0 %v134
    %216 = vmatmul.f32.gmra.mxu0 %v177
    %v217 = vpop.f32.mrf.mxu0
    %v218 = vadd.f32 0.0, %v217
    %219 = vmatmul.f32.gmra.mxu0 %v180
    %v220 = vpop.f32.mrf.mxu0
    %v221 = vadd.f32 0.0, %v220
    %222 = vmatmul.f32.gmra.mxu0 %v183
    %v223 = vpop.f32.mrf.mxu0
    %v224 = vadd.f32 0.0, %v223
    %225 = vmatmul.f32.gmra.mxu0 %v186
    %v226 = vpop.f32.mrf.mxu0
    %v227 = vadd.f32 0.0, %v226
    %228 = vmatmul.f32.gmra.mxu0 %v189
    %v229 = vpop.f32.mrf.mxu0
    %v230 = vadd.f32 0.0, %v229
    %231 = vmatmul.f32.gmra.mxu0 %v192
    %v232 = vpop.f32.mrf.mxu0
    %v233 = vadd.f32 0.0, %v232
    %234 = vmatmul.f32.gmra.mxu0 %v195
    %v235 = vpop.f32.mrf.mxu0
    %v236 = vadd.f32 0.0, %v235
    %237 = vmatmul.f32.gmra.mxu0 %v198
    %v238 = vpop.f32.mrf.mxu0
    %v239 = vadd.f32 0.0, %v238
    %240 = vdwg.mxu0
    %v241 = vld [vmem:[%s4] sm:$0xff]
    %v242 = vld [vmem:[%s5] sm:$0x1]
    %v244 = vperm.slane %v242, 0
    %vm246 = vcmask 64512
    %v248 = vsel %vm246, %v218, 0
    %v251 = vsel %vm246, %v221, 0
    %v254 = vsel %vm246, %v224, 0
    %v257 = vsel %vm246, %v227, 0
    %v260 = vsel %vm246, %v230, 0
    %v263 = vsel %vm246, %v233, 0
    %v266 = vsel %vm246, %v236, 0
    %v269 = vsel %vm246, %v239, 0
    %271 = vmatpush.msra.mxu0 0.0
    %272 = vmatpush.msra.mxu0 0.0
    %273 = vmatpush.msra.mxu0 0.0
    %274 = vmatpush.msra.mxu0 0.0
    %275 = vmatpush.msra.mxu0 0.0
    %276 = vmatpush.msra.mxu0 0.0
    %277 = vmatpush.msra.mxu0 0.0
    %278 = vmatpush.msra.mxu0 0.0
    %279 = vmatpush.msra.mxu0 0.0
    %280 = vmatpush.msra.mxu0 0.0
    %281 = vmatpush.msra.mxu0 0.0
    %282 = vmatpush.msra.mxu0 0.0
    %283 = vmatpush.msra.mxu0 0.0
    %284 = vmatpush.msra.mxu0 0.0
    %285 = vmatpush.msra.mxu0 0.0
    %286 = vmatpush.msra.mxu0 %v241
    %287 = vmatmul.f32.gmra.mxu0 %v248
    %v288 = vpop.f32.mrf.mxu0
    %v289 = vadd.f32 %v244, %v288
    %290 = vmatmul.f32.gmra.mxu0 %v251
    %v291 = vpop.f32.mrf.mxu0
    %v292 = vadd.f32 %v244, %v291
    %293 = vmatmul.f32.gmra.mxu0 %v254
    %v294 = vpop.f32.mrf.mxu0
    %v295 = vadd.f32 %v244, %v294
    %296 = vmatmul.f32.gmra.mxu0 %v257
    %v297 = vpop.f32.mrf.mxu0
    %v298 = vadd.f32 %v244, %v297
    %299 = vmatmul.f32.gmra.mxu0 %v260
    %v300 = vpop.f32.mrf.mxu0
    %v301 = vadd.f32 %v244, %v300
    %302 = vmatmul.f32.gmra.mxu0 %v263
    %v303 = vpop.f32.mrf.mxu0
    %v304 = vadd.f32 %v244, %v303
    %305 = vmatmul.f32.gmra.mxu0 %v266
    %v306 = vpop.f32.mrf.mxu0
    %v307 = vadd.f32 %v244, %v306
    %308 = vmatmul.f32.gmra.mxu0 %v269
    %v309 = vpop.f32.mrf.mxu0
    %v310 = vadd.f32 %v244, %v309
    %311 = vdwg.mxu0
    %v312 = vmax.f32 %v289, 0.0
    %v313 = vmax.f32 %v292, 0.0
    %v314 = vmax.f32 %v295, 0.0
    %v315 = vmax.f32 %v298, 0.0
    %v316 = vmax.f32 %v301, 0.0
    %v317 = vmax.f32 %v304, 0.0
    %v318 = vmax.f32 %v307, 0.0
    %v319 = vmax.f32 %v310, 0.0
    %v320 = vld [vmem:[%s6] sm:$0xff]
    %v321 = vld [vmem:[%s6 + $0x8] sm:$0xff]
    %v322 = vld [vmem:[%s6 + $0x10] sm:$0xff]
    %v323 = vld [vmem:[%s6 + $0x18] sm:$0xff]
    %v324 = vld [vmem:[%s7] sm:$0x1]
    %v326 = vperm.slane %v324, 0
    %vm328 = vcmask 261120
    %v330 = vsel %vm328, %v312, 0
    %v333 = vsel %vm328, %v313, 0
    %v336 = vsel %vm328, %v314, 0
    %v339 = vsel %vm328, %v315, 0
    %v342 = vsel %vm328, %v316, 0
    %v345 = vsel %vm328, %v317, 0
    %v348 = vsel %vm328, %v318, 0
    %v351 = vsel %vm328, %v319, 0
    %353 = vmatpush.msra.mxu0 0.0
    %354 = vmatpush.msra.mxu0 0.0
    %355 = vmatpush.msra.mxu0 0.0
    %356 = vmatpush.msra.mxu0 0.0
    %357 = vmatpush.msra.mxu0 0.0
    %358 = vmatpush.msra.mxu0 0.0
    %359 = vmatpush.msra.mxu0 0.0
    %360 = vmatpush.msra.mxu0 0.0
    %361 = vmatpush.msra.mxu0 0.0
    %362 = vmatpush.msra.mxu0 0.0
    %363 = vmatpush.msra.mxu0 0.0
    %364 = vmatpush.msra.mxu0 0.0
    %365 = vmatpush.msra.mxu0 %v323
    %366 = vmatpush.msra.mxu0 %v322
    %367 = vmatpush.msra.mxu0 %v321
    %368 = vmatpush.msra.mxu0 %v320
    %369 = vmatmul.f32.gmra.mxu0 %v330
    %v370 = vpop.f32.mrf.mxu0
    %v371 = vadd.f32 %v326, %v370
    %372 = vmatmul.f32.gmra.mxu0 %v333
    %v373 = vpop.f32.mrf.mxu0
    %v374 = vadd.f32 %v326, %v373
    %375 = vmatmul.f32.gmra.mxu0 %v336
    %v376 = vpop.f32.mrf.mxu0
    %v377 = vadd.f32 %v326, %v376
    %378 = vmatmul.f32.gmra.mxu0 %v339
    %v379 = vpop.f32.mrf.mxu0
    %v380 = vadd.f32 %v326, %v379
    %381 = vmatmul.f32.gmra.mxu0 %v342
    %v382 = vpop.f32.mrf.mxu0
    %v383 = vadd.f32 %v326, %v382
    %384 = vmatmul.f32.gmra.mxu0 %v345
    %v385 = vpop.f32.mrf.mxu0
    %v386 = vadd.f32 %v326, %v385
    %387 = vmatmul.f32.gmra.mxu0 %v348
    %v388 = vpop.f32.mrf.mxu0
    %v389 = vadd.f32 %v326, %v388
    %390 = vmatmul.f32.gmra.mxu0 %v351
    %v391 = vpop.f32.mrf.mxu0
    %v392 = vadd.f32 %v326, %v391
    %393 = vdwg.mxu0
    %v394 = vmax.f32 %v371, 0.0
    %v395 = vmax.f32 %v374, 0.0
    %v396 = vmax.f32 %v377, 0.0
    %v397 = vmax.f32 %v380, 0.0
    %v398 = vmax.f32 %v383, 0.0
    %v399 = vmax.f32 %v386, 0.0
    %v400 = vmax.f32 %v389, 0.0
    %v401 = vmax.f32 %v392, 0.0
    %402 = vmatpush.msra.mxu0 0.0
    %403 = vmatpush.msra.mxu0 0.0
    %404 = vmatpush.msra.mxu0 0.0
    %405 = vmatpush.msra.mxu0 0.0
    %406 = vmatpush.msra.mxu0 0.0
    %407 = vmatpush.msra.mxu0 0.0
    %408 = vmatpush.msra.mxu0 0.0
    %409 = vmatpush.msra.mxu0 0.0
    %410 = vmatpush.msra.mxu0 %v401
    %411 = vmatpush.msra.mxu0 %v400
    %412 = vmatpush.msra.mxu0 %v399
    %413 = vmatpush.msra.mxu0 %v398
    %414 = vmatpush.msra.mxu0 %v397
    %415 = vmatpush.msra.mxu0 %v396
    %416 = vmatpush.msra.mxu0 %v395
    %417 = vmatpush.msra.mxu0 %v394
    %418 = vmatmul.f32.gmra.mxu0 %v153
    %v419 = vpop.f32.mrf.mxu0
    %v420 = vadd.f32 0.0, %v419
    %421 = vdwg.mxu0
    %v422 = vld [vmem:[%s21] sm:$0xff]
    %v423 = vld [vmem:[%s21 + $0x8] sm:$0xff]
    %v424 = vld [vmem:[%s21 + $0x10] sm:$0xff]
    %v425 = vld [vmem:[%s21 + $0x18] sm:$0xff]
    %v427 = vsel %vm328, %v420, 0
    %429 = vmatpush.msra.mxu0 0.0
    %430 = vmatpush.msra.mxu0 0.0
    %431 = vmatpush.msra.mxu0 0.0
    %432 = vmatpush.msra.mxu0 0.0
    %433 = vmatpush.msra.mxu0 0.0
    %434 = vmatpush.msra.mxu0 0.0
    %435 = vmatpush.msra.mxu0 0.0
    %436 = vmatpush.msra.mxu0 0.0
    %437 = vmatpush.msra.mxu0 0.0
    %438 = vmatpush.msra.mxu0 0.0
    %439 = vmatpush.msra.mxu0 0.0
    %440 = vmatpush.msra.mxu0 0.0
    %441 = vmatpush.msra.mxu0 %v425
    %442 = vmatpush.msra.mxu0 %v424
    %443 = vmatpush.msra.mxu0 %v423
    %444 = vmatpush.msra.mxu0 %v422
    %445 = vmatmul.f32.gmra.mxu0 %v427
    %v446 = vpop.f32.mrf.mxu0
    %v447 = vadd.f32 0.0, %v446
    %448 = vdwg.mxu0
    %v450 = vsel %vm246, %v173, 0
    %452 = vmatpush.msra.mxu0 0.0
    %453 = vmatpush.msra.mxu0 0.0
    %454 = vmatpush.msra.mxu0 0.0
    %455 = vmatpush.msra.mxu0 0.0
    %456 = vmatpush.msra.mxu0 0.0
    %457 = vmatpush.msra.mxu0 0.0
    %458 = vmatpush.msra.mxu0 0.0
    %459 = vmatpush.msra.mxu0 0.0
    %460 = vmatpush.msra.mxu0 0.0
    %461 = vmatpush.msra.mxu0 0.0
    %462 = vmatpush.msra.mxu0 0.0
    %463 = vmatpush.msra.mxu0 0.0
    %464 = vmatpush.msra.mxu0 0.0
    %465 = vmatpush.msra.mxu0 0.0
    %466 = vmatpush.msra.mxu0 0.0
    %467 = vmatpush.msra.mxu0 %v175
    %468 = vmatmul.f32.gmra.mxu0 %v450
    %v469 = vpop.f32.mrf.mxu0
    %v470 = vadd.f32 %v447, %v469
    %471 = vdwg.mxu0
    %472 = vmatpush.msra.mxu0 0.0
    %473 = vmatpush.msra.mxu0 0.0
    %474 = vmatpush.msra.mxu0 0.0
    %475 = vmatpush.msra.mxu0 0.0
    %476 = vmatpush.msra.mxu0 0.0
    %477 = vmatpush.msra.mxu0 0.0
    %478 = vmatpush.msra.mxu0 0.0
    %479 = vmatpush.msra.mxu0 0.0
    %480 = vmatpush.msra.mxu0 %v401
    %481 = vmatpush.msra.mxu0 %v400
    %482 = vmatpush.msra.mxu0 %v399
    %483 = vmatpush.msra.mxu0 %v398
    %484 = vmatpush.msra.mxu0 %v397
    %485 = vmatpush.msra.mxu0 %v396
    %486 = vmatpush.msra.mxu0 %v395
    %487 = vmatpush.msra.mxu0 %v394
    %488 = vmatmul.f32.gmra.mxu0 %v177
    %v489 = vpop.f32.mrf.mxu0
    %v490 = vadd.f32 0.0, %v489
    %491 = vmatmul.f32.gmra.mxu0 %v180
    %v492 = vpop.f32.mrf.mxu0
    %v493 = vadd.f32 0.0, %v492
    %494 = vmatmul.f32.gmra.mxu0 %v183
    %v495 = vpop.f32.mrf.mxu0
    %v496 = vadd.f32 0.0, %v495
    %497 = vmatmul.f32.gmra.mxu0 %v186
    %v498 = vpop.f32.mrf.mxu0
    %v499 = vadd.f32 0.0, %v498
    %500 = vmatmul.f32.gmra.mxu0 %v189
    %v501 = vpop.f32.mrf.mxu0
    %v502 = vadd.f32 0.0, %v501
    %503 = vmatmul.f32.gmra.mxu0 %v192
    %v504 = vpop.f32.mrf.mxu0
    %v505 = vadd.f32 0.0, %v504
    %506 = vmatmul.f32.gmra.mxu0 %v195
    %v507 = vpop.f32.mrf.mxu0
    %v508 = vadd.f32 0.0, %v507
    %509 = vmatmul.f32.gmra.mxu0 %v198
    %v510 = vpop.f32.mrf.mxu0
    %v511 = vadd.f32 0.0, %v510
    %512 = vdwg.mxu0
    %v513 = vld [vmem:[%s8] sm:$0xff]
    %v514 = vld [vmem:[%s8 + $0x8] sm:$0xff]
    %v515 = vld [vmem:[%s8 + $0x10] sm:$0xff]
    %v516 = vld [vmem:[%s8 + $0x18] sm:$0xff]
    %v517 = vld [vmem:[%s9] sm:$0x1]
    %v519 = vperm.slane %v517, 0
    %v522 = vsel %vm328, %v490, 0
    %v525 = vsel %vm328, %v493, 0
    %v528 = vsel %vm328, %v496, 0
    %v531 = vsel %vm328, %v499, 0
    %v534 = vsel %vm328, %v502, 0
    %v537 = vsel %vm328, %v505, 0
    %v540 = vsel %vm328, %v508, 0
    %v543 = vsel %vm328, %v511, 0
    %545 = vmatpush.msra.mxu0 0.0
    %546 = vmatpush.msra.mxu0 0.0
    %547 = vmatpush.msra.mxu0 0.0
    %548 = vmatpush.msra.mxu0 0.0
    %549 = vmatpush.msra.mxu0 0.0
    %550 = vmatpush.msra.mxu0 0.0
    %551 = vmatpush.msra.mxu0 0.0
    %552 = vmatpush.msra.mxu0 0.0
    %553 = vmatpush.msra.mxu0 0.0
    %554 = vmatpush.msra.mxu0 0.0
    %555 = vmatpush.msra.mxu0 0.0
    %556 = vmatpush.msra.mxu0 0.0
    %557 = vmatpush.msra.mxu0 %v516
    %558 = vmatpush.msra.mxu0 %v515
    %559 = vmatpush.msra.mxu0 %v514
    %560 = vmatpush.msra.mxu0 %v513
    %561 = vmatmul.f32.gmra.mxu0 %v522
    %v562 = vpop.f32.mrf.mxu0
    %v563 = vadd.f32 %v519, %v562
    %564 = vmatmul.f32.gmra.mxu0 %v525
    %v565 = vpop.f32.mrf.mxu0
    %v566 = vadd.f32 %v519, %v565
    %567 = vmatmul.f32.gmra.mxu0 %v528
    %v568 = vpop.f32.mrf.mxu0
    %v569 = vadd.f32 %v519, %v568
    %570 = vmatmul.f32.gmra.mxu0 %v531
    %v571 = vpop.f32.mrf.mxu0
    %v572 = vadd.f32 %v519, %v571
    %573 = vmatmul.f32.gmra.mxu0 %v534
    %v574 = vpop.f32.mrf.mxu0
    %v575 = vadd.f32 %v519, %v574
    %576 = vmatmul.f32.gmra.mxu0 %v537
    %v577 = vpop.f32.mrf.mxu0
    %v578 = vadd.f32 %v519, %v577
    %579 = vmatmul.f32.gmra.mxu0 %v540
    %v580 = vpop.f32.mrf.mxu0
    %v581 = vadd.f32 %v519, %v580
    %582 = vmatmul.f32.gmra.mxu0 %v543
    %v583 = vpop.f32.mrf.mxu0
    %v584 = vadd.f32 %v519, %v583
    %585 = vdwg.mxu0
    %v586 = vmax.f32 %v563, 0.0
    %v587 = vmax.f32 %v566, 0.0
    %v588 = vmax.f32 %v569, 0.0
    %v589 = vmax.f32 %v572, 0.0
    %v590 = vmax.f32 %v575, 0.0
    %v591 = vmax.f32 %v578, 0.0
    %v592 = vmax.f32 %v581, 0.0
    %v593 = vmax.f32 %v584, 0.0
    %v594 = vld [vmem:[%s10] sm:$0xff]
    %v595 = vld [vmem:[%s10 + $0x8] sm:$0xff]
    %v596 = vld [vmem:[%s10 + $0x10] sm:$0xff]
    %v597 = vld [vmem:[%s10 + $0x18] sm:$0xff]
    %v598 = vld [vmem:[%s11] sm:$0x1]
    %v600 = vperm.slane %v598, 0
    %v603 = vsel %vm328, %v586, 0
    %v606 = vsel %vm328, %v587, 0
    %v609 = vsel %vm328, %v588, 0
    %v612 = vsel %vm328, %v589, 0
    %v615 = vsel %vm328, %v590, 0
    %v618 = vsel %vm328, %v591, 0
    %v621 = vsel %vm328, %v592, 0
    %v624 = vsel %vm328, %v593, 0
    %626 = vmatpush.msra.mxu0 0.0
    %627 = vmatpush.msra.mxu0 0.0
    %628 = vmatpush.msra.mxu0 0.0
    %629 = vmatpush.msra.mxu0 0.0
    %630 = vmatpush.msra.mxu0 0.0
    %631 = vmatpush.msra.mxu0 0.0
    %632 = vmatpush.msra.mxu0 0.0
    %633 = vmatpush.msra.mxu0 0.0
    %634 = vmatpush.msra.mxu0 0.0
    %635 = vmatpush.msra.mxu0 0.0
    %636 = vmatpush.msra.mxu0 0.0
    %637 = vmatpush.msra.mxu0 0.0
    %638 = vmatpush.msra.mxu0 %v597
    %639 = vmatpush.msra.mxu0 %v596
    %640 = vmatpush.msra.mxu0 %v595
    %641 = vmatpush.msra.mxu0 %v594
    %642 = vmatmul.f32.gmra.mxu0 %v603
    %v643 = vpop.f32.mrf.mxu0
    %v644 = vadd.f32 %v600, %v643
    %645 = vmatmul.f32.gmra.mxu0 %v606
    %v646 = vpop.f32.mrf.mxu0
    %v647 = vadd.f32 %v600, %v646
    %648 = vmatmul.f32.gmra.mxu0 %v609
    %v649 = vpop.f32.mrf.mxu0
    %v650 = vadd.f32 %v600, %v649
    %651 = vmatmul.f32.gmra.mxu0 %v612
    %v652 = vpop.f32.mrf.mxu0
    %v653 = vadd.f32 %v600, %v652
    %654 = vmatmul.f32.gmra.mxu0 %v615
    %v655 = vpop.f32.mrf.mxu0
    %v656 = vadd.f32 %v600, %v655
    %657 = vmatmul.f32.gmra.mxu0 %v618
    %v658 = vpop.f32.mrf.mxu0
    %v659 = vadd.f32 %v600, %v658
    %660 = vmatmul.f32.gmra.mxu0 %v621
    %v661 = vpop.f32.mrf.mxu0
    %v662 = vadd.f32 %v600, %v661
    %663 = vmatmul.f32.gmra.mxu0 %v624
    %v664 = vpop.f32.mrf.mxu0
    %v665 = vadd.f32 %v600, %v664
    %666 = vdwg.mxu0
    %v667 = vmax.f32 %v644, 0.0
    %v668 = vmax.f32 %v647, 0.0
    %v669 = vmax.f32 %v650, 0.0
    %v670 = vmax.f32 %v653, 0.0
    %v671 = vmax.f32 %v656, 0.0
    %v672 = vmax.f32 %v659, 0.0
    %v673 = vmax.f32 %v662, 0.0
    %v674 = vmax.f32 %v665, 0.0
    %675 = vmatpush.msra.mxu0 0.0
    %676 = vmatpush.msra.mxu0 0.0
    %677 = vmatpush.msra.mxu0 0.0
    %678 = vmatpush.msra.mxu0 0.0
    %679 = vmatpush.msra.mxu0 0.0
    %680 = vmatpush.msra.mxu0 0.0
    %681 = vmatpush.msra.mxu0 0.0
    %682 = vmatpush.msra.mxu0 0.0
    %683 = vmatpush.msra.mxu0 %v674
    %684 = vmatpush.msra.mxu0 %v673
    %685 = vmatpush.msra.mxu0 %v672
    %686 = vmatpush.msra.mxu0 %v671
    %687 = vmatpush.msra.mxu0 %v670
    %688 = vmatpush.msra.mxu0 %v669
    %689 = vmatpush.msra.mxu0 %v668
    %690 = vmatpush.msra.mxu0 %v667
    %691 = vmatmul.f32.gmra.mxu0 %v153
    %v692 = vpop.f32.mrf.mxu0
    %v693 = vadd.f32 0.0, %v692
    %694 = vdwg.mxu0
    %v695 = vld [vmem:[%s22] sm:$0xff]
    %v696 = vld [vmem:[%s22 + $0x8] sm:$0xff]
    %v697 = vld [vmem:[%s22 + $0x10] sm:$0xff]
    %v698 = vld [vmem:[%s22 + $0x18] sm:$0xff]
    %v700 = vsel %vm328, %v693, 0
    %702 = vmatpush.msra.mxu0 0.0
    %703 = vmatpush.msra.mxu0 0.0
    %704 = vmatpush.msra.mxu0 0.0
    %705 = vmatpush.msra.mxu0 0.0
    %706 = vmatpush.msra.mxu0 0.0
    %707 = vmatpush.msra.mxu0 0.0
    %708 = vmatpush.msra.mxu0 0.0
    %709 = vmatpush.msra.mxu0 0.0
    %710 = vmatpush.msra.mxu0 0.0
    %711 = vmatpush.msra.mxu0 0.0
    %712 = vmatpush.msra.mxu0 0.0
    %713 = vmatpush.msra.mxu0 0.0
    %714 = vmatpush.msra.mxu0 %v698
    %715 = vmatpush.msra.mxu0 %v697
    %716 = vmatpush.msra.mxu0 %v696
    %717 = vmatpush.msra.mxu0 %v695
    %718 = vmatmul.f32.gmra.mxu0 %v700
    %v719 = vpop.f32.mrf.mxu0
    %v720 = vadd.f32 0.0, %v719
    %721 = vdwg.mxu0
    %v722 = vadd.f32 %v470, %v720
    %723 = vmatpush.msra.mxu0 0.0
    %724 = vmatpush.msra.mxu0 0.0
    %725 = vmatpush.msra.mxu0 0.0
    %726 = vmatpush.msra.mxu0 0.0
    %727 = vmatpush.msra.mxu0 0.0
    %728 = vmatpush.msra.mxu0 0.0
    %729 = vmatpush.msra.mxu0 0.0
    %730 = vmatpush.msra.mxu0 0.0
    %731 = vmatpush.msra.mxu0 %v674
    %732 = vmatpush.msra.mxu0 %v673
    %733 = vmatpush.msra.mxu0 %v672
    %734 = vmatpush.msra.mxu0 %v671
    %735 = vmatpush.msra.mxu0 %v670
    %736 = vmatpush.msra.mxu0 %v669
    %737 = vmatpush.msra.mxu0 %v668
    %738 = vmatpush.msra.mxu0 %v667
    %739 = vmatmul.f32.gmra.mxu0 %v177
    %v740 = vpop.f32.mrf.mxu0
    %v741 = vadd.f32 0.0, %v740
    %742 = vmatmul.f32.gmra.mxu0 %v180
    %v743 = vpop.f32.mrf.mxu0
    %v744 = vadd.f32 0.0, %v743
    %745 = vmatmul.f32.gmra.mxu0 %v183
    %v746 = vpop.f32.mrf.mxu0
    %v747 = vadd.f32 0.0, %v746
    %748 = vmatmul.f32.gmra.mxu0 %v186
    %v749 = vpop.f32.mrf.mxu0
    %v750 = vadd.f32 0.0, %v749
    %751 = vmatmul.f32.gmra.mxu0 %v189
    %v752 = vpop.f32.mrf.mxu0
    %v753 = vadd.f32 0.0, %v752
    %754 = vmatmul.f32.gmra.mxu0 %v192
    %v755 = vpop.f32.mrf.mxu0
    %v756 = vadd.f32 0.0, %v755
    %757 = vmatmul.f32.gmra.mxu0 %v195
    %v758 = vpop.f32.mrf.mxu0
    %v759 = vadd.f32 0.0, %v758
    %760 = vmatmul.f32.gmra.mxu0 %v198
    %v761 = vpop.f32.mrf.mxu0
    %v762 = vadd.f32 0.0, %v761
    %763 = vdwg.mxu0
    %v764 = vld [vmem:[%s12] sm:$0xff]
    %v765 = vld [vmem:[%s12 + $0x8] sm:$0xff]
    %v766 = vld [vmem:[%s12 + $0x10] sm:$0xff]
    %v767 = vld [vmem:[%s12 + $0x18] sm:$0xff]
    %v768 = vld [vmem:[%s13] sm:$0x1]
    %v770 = vperm.slane %v768, 0
    %v773 = vsel %vm328, %v741, 0
    %v776 = vsel %vm328, %v744, 0
    %v779 = vsel %vm328, %v747, 0
    %v782 = vsel %vm328, %v750, 0
    %v785 = vsel %vm328, %v753, 0
    %v788 = vsel %vm328, %v756, 0
    %v791 = vsel %vm328, %v759, 0
    %v794 = vsel %vm328, %v762, 0
    %796 = vmatpush.msra.mxu0 0.0
    %797 = vmatpush.msra.mxu0 0.0
    %798 = vmatpush.msra.mxu0 0.0
    %799 = vmatpush.msra.mxu0 0.0
    %800 = vmatpush.msra.mxu0 0.0
    %801 = vmatpush.msra.mxu0 0.0
    %802 = vmatpush.msra.mxu0 0.0
    %803 = vmatpush.msra.mxu0 0.0
    %804 = vmatpush.msra.mxu0 0.0
    %805 = vmatpush.msra.mxu0 0.0
    %806 = vmatpush.msra.mxu0 0.0
    %807 = vmatpush.msra.mxu0 0.0
    %808 = vmatpush.msra.mxu0 %v767
    %809 = vmatpush.msra.mxu0 %v766
    %810 = vmatpush.msra.mxu0 %v765
    %811 = vmatpush.msra.mxu0 %v764
    %812 = vmatmul.f32.gmra.mxu0 %v773
    %v813 = vpop.f32.mrf.mxu0
    %v814 = vadd.f32 %v770, %v813
    %815 = vmatmul.f32.gmra.mxu0 %v776
    %v816 = vpop.f32.mrf.mxu0
    %v817 = vadd.f32 %v770, %v816
    %818 = vmatmul.f32.gmra.mxu0 %v779
    %v819 = vpop.f32.mrf.mxu0
    %v820 = vadd.f32 %v770, %v819
    %821 = vmatmul.f32.gmra.mxu0 %v782
    %v822 = vpop.f32.mrf.mxu0
    %v823 = vadd.f32 %v770, %v822
    %824 = vmatmul.f32.gmra.mxu0 %v785
    %v825 = vpop.f32.mrf.mxu0
    %v826 = vadd.f32 %v770, %v825
    %827 = vmatmul.f32.gmra.mxu0 %v788
    %v828 = vpop.f32.mrf.mxu0
    %v829 = vadd.f32 %v770, %v828
    %830 = vmatmul.f32.gmra.mxu0 %v791
    %v831 = vpop.f32.mrf.mxu0
    %v832 = vadd.f32 %v770, %v831
    %833 = vmatmul.f32.gmra.mxu0 %v794
    %v834 = vpop.f32.mrf.mxu0
    %v835 = vadd.f32 %v770, %v834
    %836 = vdwg.mxu0
    %v837 = vmax.f32 %v814, 0.0
    %v838 = vmax.f32 %v817, 0.0
    %v839 = vmax.f32 %v820, 0.0
    %v840 = vmax.f32 %v823, 0.0
    %v841 = vmax.f32 %v826, 0.0
    %v842 = vmax.f32 %v829, 0.0
    %v843 = vmax.f32 %v832, 0.0
    %v844 = vmax.f32 %v835, 0.0
    %v845 = vld [vmem:[%s14] sm:$0xff]
    %v846 = vld [vmem:[%s14 + $0x8] sm:$0xff]
    %v847 = vld [vmem:[%s14 + $0x10] sm:$0xff]
    %v848 = vld [vmem:[%s14 + $0x18] sm:$0xff]
    %v849 = vld [vmem:[%s15] sm:$0x1]
    %v851 = vperm.slane %v849, 0
    %v854 = vsel %vm328, %v837, 0
    %v857 = vsel %vm328, %v838, 0
    %v860 = vsel %vm328, %v839, 0
    %v863 = vsel %vm328, %v840, 0
    %v866 = vsel %vm328, %v841, 0
    %v869 = vsel %vm328, %v842, 0
    %v872 = vsel %vm328, %v843, 0
    %v875 = vsel %vm328, %v844, 0
    %877 = vmatpush.msra.mxu0 0.0
    %878 = vmatpush.msra.mxu0 0.0
    %879 = vmatpush.msra.mxu0 0.0
    %880 = vmatpush.msra.mxu0 0.0
    %881 = vmatpush.msra.mxu0 0.0
    %882 = vmatpush.msra.mxu0 0.0
    %883 = vmatpush.msra.mxu0 0.0
    %884 = vmatpush.msra.mxu0 0.0
    %885 = vmatpush.msra.mxu0 0.0
    %886 = vmatpush.msra.mxu0 0.0
    %887 = vmatpush.msra.mxu0 0.0
    %888 = vmatpush.msra.mxu0 0.0
    %889 = vmatpush.msra.mxu0 %v848
    %890 = vmatpush.msra.mxu0 %v847
    %891 = vmatpush.msra.mxu0 %v846
    %892 = vmatpush.msra.mxu0 %v845
    %893 = vmatmul.f32.gmra.mxu0 %v854
    %v894 = vpop.f32.mrf.mxu0
    %v895 = vadd.f32 %v851, %v894
    %896 = vmatmul.f32.gmra.mxu0 %v857
    %v897 = vpop.f32.mrf.mxu0
    %v898 = vadd.f32 %v851, %v897
    %899 = vmatmul.f32.gmra.mxu0 %v860
    %v900 = vpop.f32.mrf.mxu0
    %v901 = vadd.f32 %v851, %v900
    %902 = vmatmul.f32.gmra.mxu0 %v863
    %v903 = vpop.f32.mrf.mxu0
    %v904 = vadd.f32 %v851, %v903
    %905 = vmatmul.f32.gmra.mxu0 %v866
    %v906 = vpop.f32.mrf.mxu0
    %v907 = vadd.f32 %v851, %v906
    %908 = vmatmul.f32.gmra.mxu0 %v869
    %v909 = vpop.f32.mrf.mxu0
    %v910 = vadd.f32 %v851, %v909
    %911 = vmatmul.f32.gmra.mxu0 %v872
    %v912 = vpop.f32.mrf.mxu0
    %v913 = vadd.f32 %v851, %v912
    %914 = vmatmul.f32.gmra.mxu0 %v875
    %v915 = vpop.f32.mrf.mxu0
    %v916 = vadd.f32 %v851, %v915
    %917 = vdwg.mxu0
    %v918 = vmax.f32 %v895, 0.0
    %v919 = vmax.f32 %v898, 0.0
    %v920 = vmax.f32 %v901, 0.0
    %v921 = vmax.f32 %v904, 0.0
    %v922 = vmax.f32 %v907, 0.0
    %v923 = vmax.f32 %v910, 0.0
    %v924 = vmax.f32 %v913, 0.0
    %v925 = vmax.f32 %v916, 0.0
    %926 = vmatpush.msra.mxu0 0.0
    %927 = vmatpush.msra.mxu0 0.0
    %928 = vmatpush.msra.mxu0 0.0
    %929 = vmatpush.msra.mxu0 0.0
    %930 = vmatpush.msra.mxu0 0.0
    %931 = vmatpush.msra.mxu0 0.0
    %932 = vmatpush.msra.mxu0 0.0
    %933 = vmatpush.msra.mxu0 0.0
    %934 = vmatpush.msra.mxu0 %v925
    %935 = vmatpush.msra.mxu0 %v924
    %936 = vmatpush.msra.mxu0 %v923
    %937 = vmatpush.msra.mxu0 %v922
    %938 = vmatpush.msra.mxu0 %v921
    %939 = vmatpush.msra.mxu0 %v920
    %940 = vmatpush.msra.mxu0 %v919
    %941 = vmatpush.msra.mxu0 %v918
    %942 = vmatmul.f32.gmra.mxu0 %v153
    %v943 = vpop.f32.mrf.mxu0
    %v944 = vadd.f32 0.0, %v943
    %945 = vdwg.mxu0
    %v946 = vld [vmem:[%s23] sm:$0xff]
    %v947 = vld [vmem:[%s23 + $0x8] sm:$0xff]
    %v948 = vld [vmem:[%s23 + $0x10] sm:$0xff]
    %v949 = vld [vmem:[%s23 + $0x18] sm:$0xff]
    %v951 = vsel %vm328, %v944, 0
    %953 = vmatpush.msra.mxu0 0.0
    %954 = vmatpush.msra.mxu0 0.0
    %955 = vmatpush.msra.mxu0 0.0
    %956 = vmatpush.msra.mxu0 0.0
    %957 = vmatpush.msra.mxu0 0.0
    %958 = vmatpush.msra.mxu0 0.0
    %959 = vmatpush.msra.mxu0 0.0
    %960 = vmatpush.msra.mxu0 0.0
    %961 = vmatpush.msra.mxu0 0.0
    %962 = vmatpush.msra.mxu0 0.0
    %963 = vmatpush.msra.mxu0 0.0
    %964 = vmatpush.msra.mxu0 0.0
    %965 = vmatpush.msra.mxu0 %v949
    %966 = vmatpush.msra.mxu0 %v948
    %967 = vmatpush.msra.mxu0 %v947
    %968 = vmatpush.msra.mxu0 %v946
    %969 = vmatmul.f32.gmra.mxu0 %v951
    %v970 = vpop.f32.mrf.mxu0
    %v971 = vadd.f32 0.0, %v970
    %972 = vdwg.mxu0
    %v973 = vadd.f32 %v722, %v971
    %974 = vmatpush.msra.mxu0 0.0
    %975 = vmatpush.msra.mxu0 0.0
    %976 = vmatpush.msra.mxu0 0.0
    %977 = vmatpush.msra.mxu0 0.0
    %978 = vmatpush.msra.mxu0 0.0
    %979 = vmatpush.msra.mxu0 0.0
    %980 = vmatpush.msra.mxu0 0.0
    %981 = vmatpush.msra.mxu0 0.0
    %982 = vmatpush.msra.mxu0 %v925
    %983 = vmatpush.msra.mxu0 %v924
    %984 = vmatpush.msra.mxu0 %v923
    %985 = vmatpush.msra.mxu0 %v922
    %986 = vmatpush.msra.mxu0 %v921
    %987 = vmatpush.msra.mxu0 %v920
    %988 = vmatpush.msra.mxu0 %v919
    %989 = vmatpush.msra.mxu0 %v918
    %990 = vmatmul.f32.gmra.mxu0 %v177
    %v991 = vpop.f32.mrf.mxu0
    %v992 = vadd.f32 0.0, %v991
    %993 = vmatmul.f32.gmra.mxu0 %v180
    %v994 = vpop.f32.mrf.mxu0
    %v995 = vadd.f32 0.0, %v994
    %996 = vmatmul.f32.gmra.mxu0 %v183
    %v997 = vpop.f32.mrf.mxu0
    %v998 = vadd.f32 0.0, %v997
    %999 = vmatmul.f32.gmra.mxu0 %v186
    %v1000 = vpop.f32.mrf.mxu0
    %v1001 = vadd.f32 0.0, %v1000
    %1002 = vmatmul.f32.gmra.mxu0 %v189
    %v1003 = vpop.f32.mrf.mxu0
    %v1004 = vadd.f32 0.0, %v1003
    %1005 = vmatmul.f32.gmra.mxu0 %v192
    %v1006 = vpop.f32.mrf.mxu0
    %v1007 = vadd.f32 0.0, %v1006
    %1008 = vmatmul.f32.gmra.mxu0 %v195
    %v1009 = vpop.f32.mrf.mxu0
    %v1010 = vadd.f32 0.0, %v1009
    %1011 = vmatmul.f32.gmra.mxu0 %v198
    %v1012 = vpop.f32.mrf.mxu0
    %v1013 = vadd.f32 0.0, %v1012
    %1014 = vdwg.mxu0
    %v1015 = vld [vmem:[%s16] sm:$0xff]
    %v1016 = vld [vmem:[%s16 + $0x8] sm:$0xff]
    %v1017 = vld [vmem:[%s16 + $0x10] sm:$0xff]
    %v1018 = vld [vmem:[%s16 + $0x18] sm:$0xff]
    %v1019 = vld [vmem:[%s17] sm:$0x1]
    %v1021 = vperm.slane %v1019, 0
    %v1024 = vsel %vm328, %v992, 0
    %v1027 = vsel %vm328, %v995, 0
    %v1030 = vsel %vm328, %v998, 0
    %v1033 = vsel %vm328, %v1001, 0
    %v1036 = vsel %vm328, %v1004, 0
    %v1039 = vsel %vm328, %v1007, 0
    %v1042 = vsel %vm328, %v1010, 0
    %v1045 = vsel %vm328, %v1013, 0
    %1047 = vmatpush.msra.mxu0 0.0
    %1048 = vmatpush.msra.mxu0 0.0
    %1049 = vmatpush.msra.mxu0 0.0
    %1050 = vmatpush.msra.mxu0 0.0
    %1051 = vmatpush.msra.mxu0 0.0
    %1052 = vmatpush.msra.mxu0 0.0
    %1053 = vmatpush.msra.mxu0 0.0
    %1054 = vmatpush.msra.mxu0 0.0
    %1055 = vmatpush.msra.mxu0 0.0
    %1056 = vmatpush.msra.mxu0 0.0
    %1057 = vmatpush.msra.mxu0 0.0
    %1058 = vmatpush.msra.mxu0 0.0
    %1059 = vmatpush.msra.mxu0 %v1018
    %1060 = vmatpush.msra.mxu0 %v1017
    %1061 = vmatpush.msra.mxu0 %v1016
    %1062 = vmatpush.msra.mxu0 %v1015
    %1063 = vmatmul.f32.gmra.mxu0 %v1024
    %v1064 = vpop.f32.mrf.mxu0
    %v1065 = vadd.f32 %v1021, %v1064
    %1066 = vmatmul.f32.gmra.mxu0 %v1027
    %v1067 = vpop.f32.mrf.mxu0
    %v1068 = vadd.f32 %v1021, %v1067
    %1069 = vmatmul.f32.gmra.mxu0 %v1030
    %v1070 = vpop.f32.mrf.mxu0
    %v1071 = vadd.f32 %v1021, %v1070
    %1072 = vmatmul.f32.gmra.mxu0 %v1033
    %v1073 = vpop.f32.mrf.mxu0
    %v1074 = vadd.f32 %v1021, %v1073
    %1075 = vmatmul.f32.gmra.mxu0 %v1036
    %v1076 = vpop.f32.mrf.mxu0
    %v1077 = vadd.f32 %v1021, %v1076
    %1078 = vmatmul.f32.gmra.mxu0 %v1039
    %v1079 = vpop.f32.mrf.mxu0
    %v1080 = vadd.f32 %v1021, %v1079
    %1081 = vmatmul.f32.gmra.mxu0 %v1042
    %v1082 = vpop.f32.mrf.mxu0
    %v1083 = vadd.f32 %v1021, %v1082
    %1084 = vmatmul.f32.gmra.mxu0 %v1045
    %v1085 = vpop.f32.mrf.mxu0
    %v1086 = vadd.f32 %v1021, %v1085
    %1087 = vdwg.mxu0
    %v1088 = vmax.f32 %v1065, 0.0
    %v1089 = vmax.f32 %v1068, 0.0
    %v1090 = vmax.f32 %v1071, 0.0
    %v1091 = vmax.f32 %v1074, 0.0
    %v1092 = vmax.f32 %v1077, 0.0
    %v1093 = vmax.f32 %v1080, 0.0
    %v1094 = vmax.f32 %v1083, 0.0
    %v1095 = vmax.f32 %v1086, 0.0
    %v1096 = vld [vmem:[%s18] sm:$0xff]
    %v1097 = vld [vmem:[%s18 + $0x8] sm:$0xff]
    %v1098 = vld [vmem:[%s18 + $0x10] sm:$0xff]
    %v1099 = vld [vmem:[%s18 + $0x18] sm:$0xff]
    %v1100 = vld [vmem:[%s19] sm:$0x1]
    %v1102 = vperm.slane %v1100, 0
    %v1105 = vsel %vm328, %v1088, 0
    %v1108 = vsel %vm328, %v1089, 0
    %v1111 = vsel %vm328, %v1090, 0
    %v1114 = vsel %vm328, %v1091, 0
    %v1117 = vsel %vm328, %v1092, 0
    %v1120 = vsel %vm328, %v1093, 0
    %v1123 = vsel %vm328, %v1094, 0
    %v1126 = vsel %vm328, %v1095, 0
    %1128 = vmatpush.msra.mxu0 0.0
    %1129 = vmatpush.msra.mxu0 0.0
    %1130 = vmatpush.msra.mxu0 0.0
    %1131 = vmatpush.msra.mxu0 0.0
    %1132 = vmatpush.msra.mxu0 0.0
    %1133 = vmatpush.msra.mxu0 0.0
    %1134 = vmatpush.msra.mxu0 0.0
    %1135 = vmatpush.msra.mxu0 0.0
    %1136 = vmatpush.msra.mxu0 0.0
    %1137 = vmatpush.msra.mxu0 0.0
    %1138 = vmatpush.msra.mxu0 0.0
    %1139 = vmatpush.msra.mxu0 0.0
    %1140 = vmatpush.msra.mxu0 %v1099
    %1141 = vmatpush.msra.mxu0 %v1098
    %1142 = vmatpush.msra.mxu0 %v1097
    %1143 = vmatpush.msra.mxu0 %v1096
    %1144 = vmatmul.f32.gmra.mxu0 %v1105
    %v1145 = vpop.f32.mrf.mxu0
    %v1146 = vadd.f32 %v1102, %v1145
    %1147 = vmatmul.f32.gmra.mxu0 %v1108
    %v1148 = vpop.f32.mrf.mxu0
    %v1149 = vadd.f32 %v1102, %v1148
    %1150 = vmatmul.f32.gmra.mxu0 %v1111
    %v1151 = vpop.f32.mrf.mxu0
    %v1152 = vadd.f32 %v1102, %v1151
    %1153 = vmatmul.f32.gmra.mxu0 %v1114
    %v1154 = vpop.f32.mrf.mxu0
    %v1155 = vadd.f32 %v1102, %v1154
    %1156 = vmatmul.f32.gmra.mxu0 %v1117
    %v1157 = vpop.f32.mrf.mxu0
    %v1158 = vadd.f32 %v1102, %v1157
    %1159 = vmatmul.f32.gmra.mxu0 %v1120
    %v1160 = vpop.f32.mrf.mxu0
    %v1161 = vadd.f32 %v1102, %v1160
    %1162 = vmatmul.f32.gmra.mxu0 %v1123
    %v1163 = vpop.f32.mrf.mxu0
    %v1164 = vadd.f32 %v1102, %v1163
    %1165 = vmatmul.f32.gmra.mxu0 %v1126
    %v1166 = vpop.f32.mrf.mxu0
    %v1167 = vadd.f32 %v1102, %v1166
    %1168 = vdwg.mxu0
    %v1169 = vmax.f32 %v1146, 0.0
    %v1170 = vmax.f32 %v1149, 0.0
    %v1171 = vmax.f32 %v1152, 0.0
    %v1172 = vmax.f32 %v1155, 0.0
    %v1173 = vmax.f32 %v1158, 0.0
    %v1174 = vmax.f32 %v1161, 0.0
    %v1175 = vmax.f32 %v1164, 0.0
    %v1176 = vmax.f32 %v1167, 0.0
    %1177 = vmatpush.msra.mxu0 0.0
    %1178 = vmatpush.msra.mxu0 0.0
    %1179 = vmatpush.msra.mxu0 0.0
    %1180 = vmatpush.msra.mxu0 0.0
    %1181 = vmatpush.msra.mxu0 0.0
    %1182 = vmatpush.msra.mxu0 0.0
    %1183 = vmatpush.msra.mxu0 0.0
    %1184 = vmatpush.msra.mxu0 0.0
    %1185 = vmatpush.msra.mxu0 %v1176
    %1186 = vmatpush.msra.mxu0 %v1175
    %1187 = vmatpush.msra.mxu0 %v1174
    %1188 = vmatpush.msra.mxu0 %v1173
    %1189 = vmatpush.msra.mxu0 %v1172
    %1190 = vmatpush.msra.mxu0 %v1171
    %1191 = vmatpush.msra.mxu0 %v1170
    %1192 = vmatpush.msra.mxu0 %v1169
    %1193 = vmatmul.f32.gmra.mxu0 %v153
    %v1194 = vpop.f32.mrf.mxu0
    %v1195 = vadd.f32 0.0, %v1194
    %1196 = vdwg.mxu0
    %v1197 = vld [vmem:[%s24] sm:$0xff]
    %v1198 = vld [vmem:[%s24 + $0x8] sm:$0xff]
    %v1199 = vld [vmem:[%s24 + $0x10] sm:$0xff]
    %v1200 = vld [vmem:[%s24 + $0x18] sm:$0xff]
    %v1202 = vsel %vm328, %v1195, 0
    %1204 = vmatpush.msra.mxu0 0.0
    %1205 = vmatpush.msra.mxu0 0.0
    %1206 = vmatpush.msra.mxu0 0.0
    %1207 = vmatpush.msra.mxu0 0.0
    %1208 = vmatpush.msra.mxu0 0.0
    %1209 = vmatpush.msra.mxu0 0.0
    %1210 = vmatpush.msra.mxu0 0.0
    %1211 = vmatpush.msra.mxu0 0.0
    %1212 = vmatpush.msra.mxu0 0.0
    %1213 = vmatpush.msra.mxu0 0.0
    %1214 = vmatpush.msra.mxu0 0.0
    %1215 = vmatpush.msra.mxu0 0.0
    %1216 = vmatpush.msra.mxu0 %v1200
    %1217 = vmatpush.msra.mxu0 %v1199
    %1218 = vmatpush.msra.mxu0 %v1198
    %1219 = vmatpush.msra.mxu0 %v1197
    %1220 = vmatmul.f32.gmra.mxu0 %v1202
    %v1221 = vpop.f32.mrf.mxu0
    %v1222 = vadd.f32 0.0, %v1221
    %1223 = vdwg.mxu0
    %v1224 = vadd.f32 %v973, %v1222
    %v1225 = vld [vmem:[%s25] sm:$0x1]
    %v1227 = vperm.slane %v1225, 0
    %v1229 = vadd.f32 %v1224, %v1227
    %vm1230 = vcmask 25600
    %v1231 = vsel %vm1230, %v1229, -inf
    %1232 = vmax.xlane.f32.xlu0 %v1231
    %v1233 = vpop.xlane.xlu0 %1232
    %v1234 = vsub.f32 %v1229, %v1233
    %v1235 = vmul.f32 %v1234, 1.442695
    %v1236 = vpow.pop %v1235
    %v1237 = vsel %vm1230, %v1236, 0.0
    %1238 = vadd.xlane.f32.xlu0 %v1237
    %v1239 = vpop.xlane.xlu0 %1238
    %v1240 = vlog2.pop %v1239
    %v1241 = vmul.f32 %v1240, 0.6931472
    %v1242 = vsub.f32 %v1234, %v1241
    %1243 = vst.msk [vmem:[#allocation2] sm:$0x3] %vm1230, %v1242
    // Predicated region
    $region106: #{drop_gin_forward.1} parent=1 // pred_check
      _
    $region107: #{drop_gin_forward.1} parent=1 // pred_check_branch
      %1245 = sbr.rel (0) target = $region109
    $region108: #{drop_gin_forward.1} parent=1 // pred_region
      %1247 = vsyncadd [#allocation3], 0
      %s1249 = sshll.u32 [#allocation2], 4
      %s1250 = int_to_ptr.vmem [resolvable:$true] %s1249
      %s1251 = sshll.u32 %s26, 4
      %s1252 = int_to_ptr.hbm [resolvable:$true] %s1251
      %1254 = dma.vmem_to_hbm [thread:$0]  %s1250, 32, %s1252, [#allocation3]
    $region109: #{drop_gin_forward.1} parent=1 // pred_fallthru
      _
    // Predicated region
    $region110: #{drop_gin_forward.1} parent=1 // pred_check
      _
    $region111: #{drop_gin_forward.1} parent=1 // pred_check_branch
      %1256 = sbr.rel (0) target = $region113
    $region112: #{drop_gin_forward.1} parent=1 // pred_region
      %1258 = dma.done [#allocation3], 32
    $region113: #{drop_gin_forward.1} parent=1 // pred_fallthru
      _
    %1259 = vsyncpa [#allocation3], 1

</llo_original>
